<compile_context>
chip_gen: v7x
topology: tpu7x:2x2x1
jax: 0.10.0
libtpu: 0.0.40
codegen_flags: <defaults>
</compile_context>

<pallas_src>
import jax
import jax.numpy as jnp
from jax import lax
from jax.experimental import pallas as pl
from jax.experimental.pallas import tpu as pltpu

HIDDEN = 32        # hidden_channels (small for the example)
HP = 128           # lane-dense padded hidden width (multiple of 128)
IN_FEAT = 3        # node feature dim for both 'gene' and 'cell'
EDGE_HID = 32      # hidden width of the shared edge MLP
NUM_REL = 2        # HeteroConv 'mean': exactly two incoming relations per dst type


def _round_up(x, m):
    return ((x + m - 1) // m) * m


# ------------------------- fused Pallas kernel -------------------------

def fused_hetero_kernel(sage_rng_ref, nn_rng_ref,            # scalar-prefetch (SMEM)
                        feats_ref, dst_ref, dstf_ref,
                        wl_ref, bl_ref, wr_ref,
                        w1_ref, b1_ref, w2_ref, b2_ref,
                        wroot_ref, bnn_ref,
                        o_ref, acc_sage, acc_nn):
    """Fused (SAGEConv + NNConv + HeteroConv mean) for one destination node type.

    Grid = (dst tile i, edge tile e); e is the reduction axis (innermost).
      sage_rng/nn_rng : (2, n_e_tiles) int32 SMEM [min dst, max dst] per edge tile
      feats_ref : (Et, 8)  f32  [xg_sage(3) | xg_nn(3) | edge_attr(1) | pad(1)]
      dst_ref   : (2, Et)  int32 dst indices (row 0 = sage, row 1 = nn), -1 = pad
      dstf_ref  : (Tn, 5)  f32  [x_dst(3) | 1/deg_sage | 1/deg_nn]
      weights   : padded to HP=128 output lanes (extra lanes zero); w2 is bf16
      o_ref     : (Tn, HP) lane-dense output slab
    """
    i = pl.program_id(0)
    e = pl.program_id(1)
    tn = o_ref.shape[0]
    et = feats_ref.shape[0]
    row_lo = i * tn
    row_hi = row_lo + tn

    @pl.when(e == 0)
    def _init():
        acc_sage[...] = jnp.zeros_like(acc_sage)
        acc_nn[...] = jnp.zeros_like(acc_nn)

    # block-sparsity gate: does this edge tile hold any dst in [row_lo, row_hi)?
    sage_active = jnp.logical_and(sage_rng_ref[1, e] >= row_lo,
                                  sage_rng_ref[0, e] < row_hi)
    nn_active = jnp.logical_and(nn_rng_ref[1, e] >= row_lo,
                                nn_rng_ref[0, e] < row_hi)

    rows = lax.broadcasted_iota(jnp.int32, (tn, et), 0) + row_lo
    feats = feats_ref[...]

    # ---------- SAGE branch ----------
    @pl.when(sage_active)
    def _sage():
        xg = feats[:, 0:IN_FEAT]                                   # (Et, 3)
        # K=3 projection on the VPU: 3 broadcast FMAs in f32 (keeps MXU free)
        xw = xg[:, 0:1] * wl_ref[0:1, :]
        for c in range(1, IN_FEAT):
            xw = xw + xg[:, c:c + 1] * wl_ref[c:c + 1, :]          # (Et, HP) f32
        # in-kernel one-hot (padded edges have dst = -1 -> never match)
        onehot = (dst_ref[0:1, :] == rows).astype(jnp.bfloat16)    # (Tn, Et)
        acc_sage[...] += jnp.dot(onehot, xw.astype(jnp.bfloat16),
                                 preferred_element_type=jnp.float32)

    # ---------- NNConv branch ----------
    @pl.when(nn_active)
    def _nn():
        xg = feats[:, IN_FEAT:2 * IN_FEAT]                         # (Et, 3)
        ea = feats[:, 2 * IN_FEAT:2 * IN_FEAT + 1]                 # (Et, 1)
        # edge MLP layer 1: K=1 -> VPU broadcast FMA + ReLU (f32)
        h = jnp.maximum(ea * w1_ref[...] + b1_ref[...], 0.0)       # (Et, EDGE_HID)
        h16 = h.astype(jnp.bfloat16)
        # layer 2 split per input channel: no (Et, 3*HP) intermediate
        msg = None
        for c in range(IN_FEAT):
            we_c = jnp.dot(h16, w2_ref[:, c * HP:(c + 1) * HP],
                           preferred_element_type=jnp.float32) \
                   + b2_ref[:, c * HP:(c + 1) * HP]                # (Et, HP) f32
            term = xg[:, c:c + 1] * we_c
            msg = term if msg is None else msg + term
        onehot = (dst_ref[1:2, :] == rows).astype(jnp.bfloat16)    # (Tn, Et)
        acc_nn[...] += jnp.dot(onehot, msg.astype(jnp.bfloat16),
                               preferred_element_type=jnp.float32)

    @pl.when(e == pl.num_programs(1) - 1)
    def _finalize():
        dstf = dstf_ref[...]
        xd = dstf[:, 0:IN_FEAT]
        inv_s = dstf[:, IN_FEAT:IN_FEAT + 1]
        inv_n = dstf[:, IN_FEAT + 1:IN_FEAT + 2]
        # root linears: K=3 -> VPU broadcast FMAs in f32
        root_s = xd[:, 0:1] * wr_ref[0:1, :]
        root_n = xd[:, 0:1] * wroot_ref[0:1, :]
        for c in range(1, IN_FEAT):
            root_s = root_s + xd[:, c:c + 1] * wr_ref[c:c + 1, :]
            root_n = root_n + xd[:, c:c + 1] * wroot_ref[c:c + 1, :]
        # exact f32 1/deg normalization applied AFTER the bf16 aggregation matmul
        out_sage = acc_sage[...] * inv_s + bl_ref[...] + root_s
        out_nn = acc_nn[...] * inv_n + bnn_ref[...] + root_n
        # HeteroConv aggr='mean' over the two edge types targeting this node type
        o_ref[...] = (out_sage + out_nn) * (1.0 / NUM_REL)


# ------------------------- wrappers / glue -------------------------

def _tile_caps():
    """tile_nd: match MXU M (256 on v6e/v7x, 128 on v5e). e_tile: large reduction tiles."""
    try:
        kind = jax.devices()[0].device_kind.lower()
    except Exception:
        kind = ""
    tile_nd_cap = 128 if "v5" in kind else 256
    e_tile_cap = 2048   # fits v7x's 64 MiB VMEM; could go 4096-8192 on v5e/v6e
    return tile_nd_cap, e_tile_cap


def _vmem_limit(tile_nd, e_tile):
    """Need-based VMEM limit (v7x-safe): double-buffered inputs + acc/out + intermediates."""
    per_in = 2 * (e_tile * 128 * 4 + 8 * e_tile * 4)   # feats (lane-padded) + dst idx, x2 bufs
    acc_out = 4 * tile_nd * HP * 4                     # 2 f32 accumulators + 2 output buffers
    inter = 8 * e_tile * HP * 4                        # in-kernel (Et,HP)-class intermediates
    need = per_in + acc_out + inter + (2 << 20)
    return int(max(16 << 20, min(48 << 20, need * 3 // 2)))


def _cost_estimate(nd_pad, e_pad):
    flops = 2 * e_pad * IN_FEAT * HP                   # sage projection (VPU)
    flops += 2 * nd_pad * e_pad * HP                   # sage aggregation (MXU)
    flops += 2 * e_pad * EDGE_HID                      # edge mlp layer 1 (VPU)
    flops += 2 * e_pad * EDGE_HID * IN_FEAT * HP       # edge mlp layer 2 (MXU, bf16)
    flops += 2 * e_pad * IN_FEAT * HP                  # per-edge message combine
    flops += 2 * nd_pad * e_pad * HP                   # nnconv aggregation (MXU)
    flops += 4 * nd_pad * IN_FEAT * HP                 # two root linears
    bytes_accessed = (
        e_pad * 8 * 4 + 2 * e_pad * 4                  # concatenated feats + dst indices
        + nd_pad * (IN_FEAT + 2) * 4                   # dst feats + inv degrees
        + nd_pad * HP * 4                              # output slab
        + (3 * IN_FEAT * HP + 2 * HP) * 4              # wl/wr/wroot/bl/bnn
        + EDGE_HID * IN_FEAT * HP * 2                  # w2 (bf16)
        + IN_FEAT * HP * 4 + 2 * EDGE_HID * 4)         # b2, w1, b1
    return pl.CostEstimate(flops=int(flops), transcendentals=0,
                           bytes_accessed=int(bytes_accessed))


def _pad_rows(x, n_rows):
    return jnp.pad(x, ((0, n_rows - x.shape[0]), (0, 0)))


def _pad_last(x, n):
    return jnp.pad(x, [(0, 0)] * (x.ndim - 1) + [(0, n - x.shape[-1])])


def _pad1(x, n, val):
    return jnp.pad(x, (0, n - x.shape[0]), constant_values=val)


def _sort_by_dst(ei, ea=None):
    order = jnp.argsort(ei[1])
    src = ei[0][order]
    dst = ei[1][order]
    ea_s = ea[order] if ea is not None else None
    return src, dst, ea_s


def _inv_deg(dst, nd_pad):
    deg = jnp.zeros((nd_pad, 1), jnp.float32).at[dst].add(1.0)
    return 1.0 / jnp.maximum(deg, 1.0)


def _tile_ranges(dst_padded, e_tile):
    """Per edge-tile [min, max] real dst index (pad = -1). All-pad tile -> (INT_MAX, -1)."""
    d = dst_padded.reshape(-1, e_tile)
    lo = jnp.where(d >= 0, d, jnp.iinfo(jnp.int32).max).min(axis=1)
    hi = jnp.where(d >= 0, d, -1).max(axis=1)
    return jnp.stack([lo, hi]).astype(jnp.int32)       # (2, n_e_tiles)


def _fused_dst(x_src_sage, ei_sage, x_src_nn, ei_nn, ea_nn, x_dst,
               sage_p, nn_p, edge_p):
    """Run the fused kernel for one destination node type; returns (n_dst, HIDDEN)."""
    n_dst = x_dst.shape[0]
    tile_nd_cap, e_tile_cap = _tile_caps()
    if n_dst <= tile_nd_cap:
        nd_pad = _round_up(n_dst, 8)
        tile_nd = nd_pad
    else:
        tile_nd = tile_nd_cap
        nd_pad = _round_up(n_dst, tile_nd)

    # shared E grid axis for both edge types (reduction axis, innermost)
    e_max = max(ei_sage.shape[1], ei_nn.shape[1])
    e_tile = min(e_tile_cap, _round_up(e_max, 128))
    e_pad = _round_up(e_max, e_tile)

    # dst-sorted edges -> contiguous dst ranges per edge tile -> block-sparsity gating
    s_src, s_dst, _ = _sort_by_dst(ei_sage)
    n_src, n_dst_idx, ea_s = _sort_by_dst(ei_nn, ea_nn)

    s_dst_p = _pad1(s_dst.astype(jnp.int32), e_pad, -1)
    n_dst_p = _pad1(n_dst_idx.astype(jnp.int32), e_pad, -1)
    dst_idx = jnp.stack([s_dst_p, n_dst_p])                         # (2, e_pad) int32

    xg_sage = _pad_rows(x_src_sage[s_src], e_pad)                   # (e_pad, 3)
    xg_nn = _pad_rows(x_src_nn[n_src], e_pad)                       # (e_pad, 3)
    ea_p = _pad_rows(ea_s, e_pad)                                   # (e_pad, 1)
    feats = jnp.concatenate(
        [xg_sage, xg_nn, ea_p, jnp.zeros((e_pad, 1), jnp.float32)], axis=1)  # (e_pad, 8)

    inv_s = _inv_deg(ei_sage[1], nd_pad)
    inv_n = _inv_deg(ei_nn[1], nd_pad)
    dstf = jnp.concatenate([_pad_rows(x_dst, nd_pad), inv_s, inv_n], axis=1)  # (nd_pad, 5)

    sage_rng = _tile_ranges(s_dst_p, e_tile)                        # (2, n_e_tiles)
    nn_rng = _tile_ranges(n_dst_p, e_tile)

    grid = (nd_pad // tile_nd, e_pad // e_tile)

    edge_map = lambda i, e, sr, nr: (e, 0)
    edge_map_t = lambda i, e, sr, nr: (0, e)
    dst_map = lambda i, e, sr, nr: (i, 0)
    const_map = lambda i, e, sr, nr: (0, 0)

    wl, bl, wr = sage_p["wl"], sage_p["bl"], sage_p["wr"]
    w1, b1, w2, b2 = edge_p["w1"], edge_p["b1"], edge_p["w2"], edge_p["b2"]
    wroot, bnn = nn_p["wroot"], nn_p["bias"]

    in_specs = [
        pl.BlockSpec((e_tile, 8), edge_map),              # feats
        pl.BlockSpec((2, e_tile), edge_map_t),            # dst indices
        pl.BlockSpec((tile_nd, IN_FEAT + 2), dst_map),    # dst feats + inv degrees
        pl.BlockSpec(wl.shape, const_map),
        pl.BlockSpec(bl.shape, const_map),
        pl.BlockSpec(wr.shape, const_map),
        pl.BlockSpec(w1.shape, const_map),
        pl.BlockSpec(b1.shape, const_map),
        pl.BlockSpec(w2.shape, const_map),
        pl.BlockSpec(b2.shape, const_map),
        pl.BlockSpec(wroot.shape, const_map),
        pl.BlockSpec(bnn.shape, const_map),
    ]

    out = pl.pallas_call(
        fused_hetero_kernel,
        out_shape=jax.ShapeDtypeStruct((nd_pad, HP), jnp.float32),
        grid_spec=pltpu.PrefetchScalarGridSpec(
            num_scalar_prefetch=2,
            grid=grid,
            in_specs=in_specs,
            out_specs=pl.BlockSpec((tile_nd, HP), dst_map),
            scratch_shapes=[pltpu.VMEM((tile_nd, HP), jnp.float32),
                            pltpu.VMEM((tile_nd, HP), jnp.float32)]),
        compiler_params=pltpu.CompilerParams(
            dimension_semantics=("parallel", "arbitrary"),
            vmem_limit_bytes=_vmem_limit(tile_nd, e_tile)),
        cost_estimate=_cost_estimate(nd_pad, e_pad),
    )(sage_rng, nn_rng, feats, dst_idx, dstf,
      wl, bl, wr, w1, b1, w2, b2, wroot, bnn)

    return out[:n_dst, :HIDDEN]


def pad_params(params):
    """Zero-pad H-output weights to HP=128 lanes; pre-cast the MXU weight (w2) to bf16."""
    e = params["edge_nn"]
    w2 = e["w2"].reshape(EDGE_HID, IN_FEAT, HIDDEN)   # row-major (C, H) blocks
    b2 = e["b2"].reshape(1, IN_FEAT, HIDDEN)
    edge_nn = {
        "w1": e["w1"],
        "b1": e["b1"],
        "w2": _pad_last(w2, HP).reshape(EDGE_HID, IN_FEAT * HP).astype(jnp.bfloat16),
        "b2": _pad_last(b2, HP).reshape(1, IN_FEAT * HP),
    }

    def pad_sage(p):
        return {"wl": _pad_last(p["wl"], HP), "bl": _pad_last(p["bl"], HP),
                "wr": _pad_last(p["wr"], HP)}

    def pad_nn(p):
        return {"wroot": _pad_last(p["wroot"], HP), "bias": _pad_last(p["bias"], HP)}

    return {"edge_nn": edge_nn,
            "sage_gg": pad_sage(params["sage_gg"]), "sage_cc": pad_sage(params["sage_cc"]),
            "nn_cg": pad_nn(params["nn_cg"]), "nn_gc": pad_nn(params["nn_gc"])}


def hetero_encoder_forward(x_dict, edge_index_dict, edge_attr_dict, params):
    x_gene, x_cell = x_dict["gene"], x_dict["cell"]
    pw = pad_params(params)

    # gene destination: SAGE(gene->gene) + NNConv(cell->gene), fused
    out_gene = _fused_dst(
        x_src_sage=x_gene, ei_sage=edge_index_dict[("gene", "interacts", "gene")],
        x_src_nn=x_cell, ei_nn=edge_index_dict[("cell", "expresses", "gene")],
        ea_nn=edge_attr_dict[("cell", "expresses", "gene")],
        x_dst=x_gene,
        sage_p=pw["sage_gg"], nn_p=pw["nn_cg"], edge_p=pw["edge_nn"])

    # cell destination: SAGE(cell->cell) + NNConv(gene->cell), fused
    out_cell = _fused_dst(
        x_src_sage=x_cell, ei_sage=edge_index_dict[("cell", "interacts", "cell")],
        x_src_nn=x_gene, ei_nn=edge_index_dict[("gene", "expressed_in", "cell")],
        ea_nn=edge_attr_dict[("gene", "expressed_in", "cell")],
        x_dst=x_cell,
        sage_p=pw["sage_cc"], nn_p=pw["nn_gc"], edge_p=pw["edge_nn"])

    return {"gene": out_gene, "cell": out_cell}


# ------------------------- deterministic params -------------------------

def init_params(key):
    ks = jax.random.split(key, 16)
    k = iter(ks)

    def lin(kk, fan_in, fan_out, scale=0.1):
        return scale * jax.random.normal(kk, (fan_in, fan_out), jnp.float32)

    def vec(kk, n, scale=0.1):
        return scale * jax.random.normal(kk, (1, n), jnp.float32)

    # shared edge MLP: Lin(1,32) -> ReLU -> Lin(32, 3*HIDDEN)
    edge_nn = {
        "w1": lin(next(k), 1, EDGE_HID), "b1": vec(next(k), EDGE_HID),
        "w2": lin(next(k), EDGE_HID, IN_FEAT * HIDDEN), "b2": vec(next(k), IN_FEAT * HIDDEN),
    }
    # SAGEConv: lin_l (with bias) on mean-aggregated neighbors, lin_r (no bias) on root
    sage_gg = {"wl": lin(next(k), IN_FEAT, HIDDEN), "bl": vec(next(k), HIDDEN),
               "wr": lin(next(k), IN_FEAT, HIDDEN)}
    sage_cc = {"wl": lin(next(k), IN_FEAT, HIDDEN), "bl": vec(next(k), HIDDEN),
               "wr": lin(next(k), IN_FEAT, HIDDEN)}
    # NNConv: root weight (no bias in lin) + output bias
    nn_cg = {"wroot": lin(next(k), IN_FEAT, HIDDEN), "bias": vec(next(k), HIDDEN)}
    nn_gc = {"wroot": lin(next(k), IN_FEAT, HIDDEN), "bias": vec(next(k), HIDDEN)}

    return {"edge_nn": edge_nn, "sage_gg": sage_gg, "sage_cc": sage_cc,
            "nn_cg": nn_cg, "nn_gc": nn_gc}


# ------------------------- pure-JAX reference -------------------------

def _reference(x_dict, edge_index_dict, edge_attr_dict, params):
    def scatter_mean(src, dst_idx, n_dst):
        num = jnp.zeros((n_dst, src.shape[1]), jnp.float32).at[dst_idx].add(src)
        cnt = jnp.zeros((n_dst, 1), jnp.float32).at[dst_idx].add(1.0)
        return num / jnp.maximum(cnt, 1.0)

    def sage(x_src, x_dst, ei, p):
        agg = scatter_mean(x_src[ei[0]], ei[1], x_dst.shape[0])
        return agg @ p["wl"] + p["bl"] + x_dst @ p["wr"]

    def nnconv(x_src, x_dst, ei, ea, p, e):
        h = jnp.maximum(ea @ e["w1"] + e["b1"], 0.0)
        we = (h @ e["w2"] + e["b2"]).reshape(-1, IN_FEAT, HIDDEN)
        m = jnp.einsum("ec,ech->eh", x_src[ei[0]], we)
        agg = scatter_mean(m, ei[1], x_dst.shape[0])
        return agg + x_dst @ p["wroot"] + p["bias"]

    xg, xc = x_dict["gene"], x_dict["cell"]
    out_gg = sage(xg, xg, edge_index_dict[("gene", "interacts", "gene")], params["sage_gg"])
    out_cc = sage(xc, xc, edge_index_dict[("cell", "interacts", "cell")], params["sage_cc"])
    out_cg = nnconv(xc, xg, edge_index_dict[("cell", "expresses", "gene")],
                    edge_attr_dict[("cell", "expresses", "gene")],
                    params["nn_cg"], params["edge_nn"])
    out_gc = nnconv(xg, xc, edge_index_dict[("gene", "expressed_in", "cell")],
                    edge_attr_dict[("gene", "expressed_in", "cell")],
                    params["nn_gc"], params["edge_nn"])
    return {"gene": 0.5 * (out_gg + out_cg), "cell": 0.5 * (out_cc + out_gc)}


# ------------------------- example run -------------------------

if __name__ == "__main__":
    key = jax.random.PRNGKey(0)
    k_x, k_e, k_p = jax.random.split(key, 3)

    n_gene, n_cell = 8, 6
    e_gg, e_cc, e_cg, e_gc = 12, 10, 16, 16

    kx1, kx2 = jax.random.split(k_x)
    x_dict = {
        "gene": jax.random.normal(kx1, (n_gene, IN_FEAT), jnp.float32),
        "cell": jax.random.normal(kx2, (n_cell, IN_FEAT), jnp.float32),
    }

    ke = jax.random.split(k_e, 6)
    edge_index_dict = {
        ("gene", "interacts", "gene"): jnp.stack([
            jax.random.randint(ke[0], (e_gg,), 0, n_gene),
            jax.random.randint(ke[1], (e_gg,), 0, n_gene)]),
        ("cell", "interacts", "cell"): jnp.stack([
            jax.random.randint(ke[2], (e_cc,), 0, n_cell),
            jax.random.randint(ke[3], (e_cc,), 0, n_cell)]),
        ("cell", "expresses", "gene"): jnp.stack([
            jax.random.randint(ke[4], (e_cg,), 0, n_cell),
            jax.random.randint(ke[5], (e_cg,), 0, n_gene)]),
        ("gene", "expressed_in", "cell"): jnp.stack([
            jax.random.randint(ke[5], (e_gc,), 0, n_gene),
            jax.random.randint(ke[4], (e_gc,), 0, n_cell)]),
    }
    ka1, ka2 = jax.random.split(jax.random.PRNGKey(7))
    edge_attr_dict = {
        ("cell", "expresses", "gene"): jax.random.normal(ka1, (e_cg, 1), jnp.float32),
        ("gene", "expressed_in", "cell"): jax.random.normal(ka2, (e_gc, 1), jnp.float32),
    }

    params = init_params(k_p)

    out = hetero_encoder_forward(x_dict, edge_index_dict, edge_attr_dict, params)
    jax.block_until_ready(out)

    assert out["gene"].shape == (n_gene, HIDDEN)
    assert out["cell"].shape == (n_cell, HIDDEN)

    # numerical check against a pure-JAX reference (bf16 MXU-operand tolerance)
    ref = _reference(x_dict, edge_index_dict, edge_attr_dict, params)
    assert bool(jnp.allclose(out["gene"], ref["gene"], atol=1e-2, rtol=1e-2))
    assert bool(jnp.allclose(out["cell"], ref["cell"], atol=1e-2, rtol=1e-2))

    print("KERNEL_OK")
</pallas_src>

<mosaic_0001>
module attributes {stable_mosaic.version = 11 : i64} {
  func.func @fused_hetero_kernel(%arg0: i32, %arg1: i32, %arg2: memref<2x1xi32, #tpu.memory_space<smem>>, %arg3: memref<2x1xi32, #tpu.memory_space<smem>>, %arg4: memref<128x8xf32, #tpu.memory_space<vmem>>, %arg5: memref<2x128xi32, #tpu.memory_space<vmem>>, %arg6: memref<8x5xf32, #tpu.memory_space<vmem>>, %arg7: memref<3x128xf32, #tpu.memory_space<vmem>>, %arg8: memref<1x128xf32, #tpu.memory_space<vmem>>, %arg9: memref<3x128xf32, #tpu.memory_space<vmem>>, %arg10: memref<1x32xf32, #tpu.memory_space<vmem>>, %arg11: memref<1x32xf32, #tpu.memory_space<vmem>>, %arg12: memref<32x384xbf16, #tpu.memory_space<vmem>>, %arg13: memref<1x384xf32, #tpu.memory_space<vmem>>, %arg14: memref<3x128xf32, #tpu.memory_space<vmem>>, %arg15: memref<1x128xf32, #tpu.memory_space<vmem>>, %arg16: memref<8x128xf32, #tpu.memory_space<vmem>>, %arg17: memref<8x128xf32, #tpu.memory_space<vmem>>, %arg18: memref<8x128xf32, #tpu.memory_space<vmem>>) attributes {dimension_semantics = [#tpu.dimension_semantics<parallel>, #tpu.dimension_semantics<arbitrary>], iteration_bounds = array<i64: 1, 1>, scalar_prefetch = 2 : i64, scratch_operands = 2 : i64, tpu.core_type = #tpu.core_type<tc>, window_params = [{transform_indices = @transform_0, window_bounds = array<i64: 128, 8>}, {transform_indices = @transform_1, window_bounds = array<i64: 2, 128>}, {transform_indices = @transform_2, window_bounds = array<i64: 8, 5>}, {pipeline_mode = #tpu.pipeline_mode<synchronous>, transform_indices = @transform_3, window_bounds = array<i64: 3, 128>}, {pipeline_mode = #tpu.pipeline_mode<synchronous>, transform_indices = @transform_4, window_bounds = array<i64: 1, 128>}, {pipeline_mode = #tpu.pipeline_mode<synchronous>, transform_indices = @transform_5, window_bounds = array<i64: 3, 128>}, {pipeline_mode = #tpu.pipeline_mode<synchronous>, transform_indices = @transform_6, window_bounds = array<i64: 1, 32>}, {pipeline_mode = #tpu.pipeline_mode<synchronous>, transform_indices = @transform_7, window_bounds = array<i64: 1, 32>}, {pipeline_mode = #tpu.pipeline_mode<synchronous>, transform_indices = @transform_8, window_bounds = array<i64: 32, 384>}, {pipeline_mode = #tpu.pipeline_mode<synchronous>, transform_indices = @transform_9, window_bounds = array<i64: 1, 384>}, {pipeline_mode = #tpu.pipeline_mode<synchronous>, transform_indices = @transform_10, window_bounds = array<i64: 3, 128>}, {pipeline_mode = #tpu.pipeline_mode<synchronous>, transform_indices = @transform_11, window_bounds = array<i64: 1, 128>}, {transform_indices = @transform_12, window_bounds = array<i64: 8, 128>}]} {
    %c8_i32 = arith.constant 8 : i32
    %0 = arith.muli %arg0, %c8_i32 : i32
    %c8_i32_0 = arith.constant 8 : i32
    %1 = arith.addi %0, %c8_i32_0 : i32
    %c0_i32 = arith.constant 0 : i32
    %2 = arith.cmpi eq, %arg1, %c0_i32 : i32
    %3 = arith.extui %2 : i1 to i32
    %c0_i32_1 = arith.constant 0 : i32
    %4 = arith.cmpi ne, %3, %c0_i32_1 : i32
    scf.if %4 {
      %cst = arith.constant 0.000000e+00 : f32
      %30 = vector.broadcast %cst : f32 to vector<8x128xf32>
      %c0_10 = arith.constant 0 : index
      %c0_11 = arith.constant 0 : index
      %31 = vector.load %arg17[%c0_10, %c0_11] : memref<8x128xf32, #tpu.memory_space<vmem>>, vector<8x128xf32>
      tpu.vector_store %arg17[%c0_10, %c0_11], %30 {strides = array<i32>} : memref<8x128xf32, #tpu.memory_space<vmem>>, vector<8x128xf32>,
      %cst_12 = arith.constant 0.000000e+00 : f32
      %32 = vector.broadcast %cst_12 : f32 to vector<8x128xf32>
      %c0_13 = arith.constant 0 : index
      %c0_14 = arith.constant 0 : index
      %33 = vector.load %arg18[%c0_13, %c0_14] : memref<8x128xf32, #tpu.memory_space<vmem>>, vector<8x128xf32>
      tpu.vector_store %arg18[%c0_13, %c0_14], %32 {strides = array<i32>} : memref<8x128xf32, #tpu.memory_space<vmem>>, vector<8x128xf32>,
    } else {
    }
    %c1 = arith.constant 1 : index
    %5 = arith.index_cast %arg1 : i32 to index
    %6 = memref.load %arg2[%c1, %5] : memref<2x1xi32, #tpu.memory_space<smem>>
    %7 = arith.cmpi sge, %6, %0 : i32
    %c0 = arith.constant 0 : index
    %8 = arith.index_cast %arg1 : i32 to index
    %9 = memref.load %arg2[%c0, %8] : memref<2x1xi32, #tpu.memory_space<smem>>
    %10 = arith.cmpi slt, %9, %1 : i32
    %11 = arith.andi %7, %10 : i1
    %c1_2 = arith.constant 1 : index
    %12 = arith.index_cast %arg1 : i32 to index
    %13 = memref.load %arg3[%c1_2, %12] : memref<2x1xi32, #tpu.memory_space<smem>>
    %14 = arith.cmpi sge, %13, %0 : i32
    %c0_3 = arith.constant 0 : index
    %15 = arith.index_cast %arg1 : i32 to index
    %16 = memref.load %arg3[%c0_3, %15] : memref<2x1xi32, #tpu.memory_space<smem>>
    %17 = arith.cmpi slt, %16, %1 : i32
    %18 = arith.andi %14, %17 : i1
    %19 = tpu.iota {dimensions = array<i32: 0>} : vector<8x128xi32>
    %20 = vector.broadcast %0 : i32 to vector<8x128xi32>
    %21 = arith.addi %19, %20 : vector<8x128xi32>
    %c0_4 = arith.constant 0 : index
    %c0_5 = arith.constant 0 : index
    %22 = vector.load %arg4[%c0_4, %c0_5] : memref<128x8xf32, #tpu.memory_space<vmem>>, vector<128x8xf32>
    %23 = arith.extui %11 : i1 to i32
    %c0_i32_6 = arith.constant 0 : i32
    %24 = arith.cmpi ne, %23, %c0_i32_6 : i32
    scf.if %24 {
      %30 = vector.extract_strided_slice %22 {offsets = [0, 0], sizes = [128, 3], strides = [1, 1]} : vector<128x8xf32> to vector<128x3xf32>
      %31 = vector.extract_strided_slice %30 {offsets = [0, 0], sizes = [128, 1], strides = [1, 1]} : vector<128x3xf32> to vector<128x1xf32>
      %c0_10 = arith.constant 0 : index
      %c0_11 = arith.constant 0 : index
      %32 = vector.load %arg7[%c0_10, %c0_11] : memref<3x128xf32, #tpu.memory_space<vmem>>, vector<1x128xf32>
      %33 = vector.broadcast %31 : vector<128x1xf32> to vector<128x128xf32>
      %34 = vector.broadcast %32 : vector<1x128xf32> to vector<128x128xf32>
      %35 = arith.mulf %33, %34 : vector<128x128xf32>
      %36 = vector.extract_strided_slice %30 {offsets = [0, 1], sizes = [128, 1], strides = [1, 1]} : vector<128x3xf32> to vector<128x1xf32>
      %c1_12 = arith.constant 1 : index
      %c0_13 = arith.constant 0 : index
      %37 = vector.load %arg7[%c1_12, %c0_13] : memref<3x128xf32, #tpu.memory_space<vmem>>, vector<1x128xf32>
      %38 = vector.broadcast %36 : vector<128x1xf32> to vector<128x128xf32>
      %39 = vector.broadcast %37 : vector<1x128xf32> to vector<128x128xf32>
      %40 = arith.mulf %38, %39 : vector<128x128xf32>
      %41 = arith.addf %35, %40 : vector<128x128xf32>
      %42 = vector.extract_strided_slice %30 {offsets = [0, 2], sizes = [128, 1], strides = [1, 1]} : vector<128x3xf32> to vector<128x1xf32>
      %c2 = arith.constant 2 : index
      %c0_14 = arith.constant 0 : index
      %43 = vector.load %arg7[%c2, %c0_14] : memref<3x128xf32, #tpu.memory_space<vmem>>, vector<1x128xf32>
      %44 = vector.broadcast %42 : vector<128x1xf32> to vector<128x128xf32>
      %45 = vector.broadcast %43 : vector<1x128xf32> to vector<128x128xf32>
      %46 = arith.mulf %44, %45 : vector<128x128xf32>
      %47 = arith.addf %41, %46 : vector<128x128xf32>
      %c0_15 = arith.constant 0 : index
      %c0_16 = arith.constant 0 : index
      %48 = vector.load %arg5[%c0_15, %c0_16] : memref<2x128xi32, #tpu.memory_space<vmem>>, vector<1x128xi32>
      %49 = vector.broadcast %48 : vector<1x128xi32> to vector<8x128xi32>
      %50 = arith.cmpi eq, %49, %21 : vector<8x128xi32>
      %51 = arith.extui %50 : vector<8x128xi1> to vector<8x128xi32>
      %52 = arith.sitofp %51 : vector<8x128xi32> to vector<8x128xf32>
      %53 = arith.truncf %52 : vector<8x128xf32> to vector<8x128xbf16>
      %c0_17 = arith.constant 0 : index
      %c0_18 = arith.constant 0 : index
      %54 = vector.load %arg17[%c0_17, %c0_18] : memref<8x128xf32, #tpu.memory_space<vmem>>, vector<8x128xf32>
      %55 = arith.truncf %47 : vector<128x128xf32> to vector<128x128xbf16>
      %cst = arith.constant dense<0.000000e+00> : vector<8x128xf32>
      %56 = tpu.matmul %53, %55, %cst {dimension_numbers = #tpu.dot_dimension_numbers<[1], [0], [0], [1], [0, 0, 1, 1], [], []>} : vector<8x128xbf16>, vector<128x128xbf16>, vector<8x128xf32> -> vector<8x128xf32>
      %57 = arith.addf %54, %56 : vector<8x128xf32>
      %c0_19 = arith.constant 0 : index
      %c0_20 = arith.constant 0 : index
      %58 = vector.load %arg17[%c0_19, %c0_20] : memref<8x128xf32, #tpu.memory_space<vmem>>, vector<8x128xf32>
      tpu.vector_store %arg17[%c0_19, %c0_20], %57 {strides = array<i32>} : memref<8x128xf32, #tpu.memory_space<vmem>>, vector<8x128xf32>,
    } else {
    }
    %25 = arith.extui %18 : i1 to i32
    %c0_i32_7 = arith.constant 0 : i32
    %26 = arith.cmpi ne, %25, %c0_i32_7 : i32
    scf.if %26 {
      %30 = vector.extract_strided_slice %22 {offsets = [0, 3], sizes = [128, 3], strides = [1, 1]} : vector<128x8xf32> to vector<128x3xf32>
      %31 = vector.extract_strided_slice %22 {offsets = [0, 6], sizes = [128, 1], strides = [1, 1]} : vector<128x8xf32> to vector<128x1xf32>
      %c0_10 = arith.constant 0 : index
      %c0_11 = arith.constant 0 : index
      %32 = vector.load %arg10[%c0_10, %c0_11] : memref<1x32xf32, #tpu.memory_space<vmem>>, vector<1x32xf32>
      %33 = vector.broadcast %31 : vector<128x1xf32> to vector<128x32xf32>
      %34 = vector.broadcast %32 : vector<1x32xf32> to vector<128x32xf32>
      %35 = arith.mulf %33, %34 : vector<128x32xf32>
      %c0_12 = arith.constant 0 : index
      %c0_13 = arith.constant 0 : index
      %36 = vector.load %arg11[%c0_12, %c0_13] : memref<1x32xf32, #tpu.memory_space<vmem>>, vector<1x32xf32>
      %37 = vector.broadcast %36 : vector<1x32xf32> to vector<128x32xf32>
      %38 = arith.addf %35, %37 : vector<128x32xf32>
      %cst = arith.constant 0.000000e+00 : f32
      %39 = vector.broadcast %cst : f32 to vector<128x32xf32>
      %40 = arith.maximumf %38, %39 : vector<128x32xf32>
      %41 = arith.truncf %40 : vector<128x32xf32> to vector<128x32xbf16>
      %c0_14 = arith.constant 0 : index
      %c0_15 = arith.constant 0 : index
      %42 = vector.load %arg12[%c0_14, %c0_15] : memref<32x384xbf16, #tpu.memory_space<vmem>>, vector<32x128xbf16>
      %cst_16 = arith.constant dense<0.000000e+00> : vector<128x128xf32>
      %43 = tpu.matmul %41, %42, %cst_16 {dimension_numbers = #tpu.dot_dimension_numbers<[1], [0], [0], [1], [0, 0, 1, 1], [], []>} : vector<128x32xbf16>, vector<32x128xbf16>, vector<128x128xf32> -> vector<128x128xf32>
      %c0_17 = arith.constant 0 : index
      %c0_18 = arith.constant 0 : index
      %44 = vector.load %arg13[%c0_17, %c0_18] : memref<1x384xf32, #tpu.memory_space<vmem>>, vector<1x128xf32>
      %45 = vector.broadcast %44 : vector<1x128xf32> to vector<128x128xf32>
      %46 = arith.addf %43, %45 : vector<128x128xf32>
      %47 = vector.extract_strided_slice %30 {offsets = [0, 0], sizes = [128, 1], strides = [1, 1]} : vector<128x3xf32> to vector<128x1xf32>
      %48 = vector.broadcast %47 : vector<128x1xf32> to vector<128x128xf32>
      %49 = arith.mulf %48, %46 : vector<128x128xf32>
      %c0_19 = arith.constant 0 : index
      %c128 = arith.constant 128 : index
      %50 = vector.load %arg12[%c0_19, %c128] : memref<32x384xbf16, #tpu.memory_space<vmem>>, vector<32x128xbf16>
      %cst_20 = arith.constant dense<0.000000e+00> : vector<128x128xf32>
      %51 = tpu.matmul %41, %50, %cst_20 {dimension_numbers = #tpu.dot_dimension_numbers<[1], [0], [0], [1], [0, 0, 1, 1], [], []>} : vector<128x32xbf16>, vector<32x128xbf16>, vector<128x128xf32> -> vector<128x128xf32>
      %c0_21 = arith.constant 0 : index
      %c128_22 = arith.constant 128 : index
      %52 = vector.load %arg13[%c0_21, %c128_22] : memref<1x384xf32, #tpu.memory_space<vmem>>, vector<1x128xf32>
      %53 = vector.broadcast %52 : vector<1x128xf32> to vector<128x128xf32>
      %54 = arith.addf %51, %53 : vector<128x128xf32>
      %55 = vector.extract_strided_slice %30 {offsets = [0, 1], sizes = [128, 1], strides = [1, 1]} : vector<128x3xf32> to vector<128x1xf32>
      %56 = vector.broadcast %55 : vector<128x1xf32> to vector<128x128xf32>
      %57 = arith.mulf %56, %54 : vector<128x128xf32>
      %58 = arith.addf %49, %57 : vector<128x128xf32>
      %c0_23 = arith.constant 0 : index
      %c256 = arith.constant 256 : index
      %59 = vector.load %arg12[%c0_23, %c256] : memref<32x384xbf16, #tpu.memory_space<vmem>>, vector<32x128xbf16>
      %cst_24 = arith.constant dense<0.000000e+00> : vector<128x128xf32>
      %60 = tpu.matmul %41, %59, %cst_24 {dimension_numbers = #tpu.dot_dimension_numbers<[1], [0], [0], [1], [0, 0, 1, 1], [], []>} : vector<128x32xbf16>, vector<32x128xbf16>, vector<128x128xf32> -> vector<128x128xf32>
      %c0_25 = arith.constant 0 : index
      %c256_26 = arith.constant 256 : index
      %61 = vector.load %arg13[%c0_25, %c256_26] : memref<1x384xf32, #tpu.memory_space<vmem>>, vector<1x128xf32>
      %62 = vector.broadcast %61 : vector<1x128xf32> to vector<128x128xf32>
      %63 = arith.addf %60, %62 : vector<128x128xf32>
      %64 = vector.extract_strided_slice %30 {offsets = [0, 2], sizes = [128, 1], strides = [1, 1]} : vector<128x3xf32> to vector<128x1xf32>
      %65 = vector.broadcast %64 : vector<128x1xf32> to vector<128x128xf32>
      %66 = arith.mulf %65, %63 : vector<128x128xf32>
      %67 = arith.addf %58, %66 : vector<128x128xf32>
      %c1_27 = arith.constant 1 : index
      %c0_28 = arith.constant 0 : index
      %68 = vector.load %arg5[%c1_27, %c0_28] : memref<2x128xi32, #tpu.memory_space<vmem>>, vector<1x128xi32>
      %69 = vector.broadcast %68 : vector<1x128xi32> to vector<8x128xi32>
      %70 = arith.cmpi eq, %69, %21 : vector<8x128xi32>
      %71 = arith.extui %70 : vector<8x128xi1> to vector<8x128xi32>
      %72 = arith.sitofp %71 : vector<8x128xi32> to vector<8x128xf32>
      %73 = arith.truncf %72 : vector<8x128xf32> to vector<8x128xbf16>
      %c0_29 = arith.constant 0 : index
      %c0_30 = arith.constant 0 : index
      %74 = vector.load %arg18[%c0_29, %c0_30] : memref<8x128xf32, #tpu.memory_space<vmem>>, vector<8x128xf32>
      %75 = arith.truncf %67 : vector<128x128xf32> to vector<128x128xbf16>
      %cst_31 = arith.constant dense<0.000000e+00> : vector<8x128xf32>
      %76 = tpu.matmul %73, %75, %cst_31 {dimension_numbers = #tpu.dot_dimension_numbers<[1], [0], [0], [1], [0, 0, 1, 1], [], []>} : vector<8x128xbf16>, vector<128x128xbf16>, vector<8x128xf32> -> vector<8x128xf32>
      %77 = arith.addf %74, %76 : vector<8x128xf32>
      %c0_32 = arith.constant 0 : index
      %c0_33 = arith.constant 0 : index
      %78 = vector.load %arg18[%c0_32, %c0_33] : memref<8x128xf32, #tpu.memory_space<vmem>>, vector<8x128xf32>
      tpu.vector_store %arg18[%c0_32, %c0_33], %77 {strides = array<i32>} : memref<8x128xf32, #tpu.memory_space<vmem>>, vector<8x128xf32>,
    } else {
    }
    %c0_i32_8 = arith.constant 0 : i32
    %27 = arith.cmpi eq, %arg1, %c0_i32_8 : i32
    %28 = arith.extui %27 : i1 to i32
    %c0_i32_9 = arith.constant 0 : i32
    %29 = arith.cmpi ne, %28, %c0_i32_9 : i32
    scf.if %29 {
      %c0_10 = arith.constant 0 : index
      %c0_11 = arith.constant 0 : index
      %30 = vector.load %arg6[%c0_10, %c0_11] : memref<8x5xf32, #tpu.memory_space<vmem>>, vector<8x5xf32>
      %31 = vector.extract_strided_slice %30 {offsets = [0, 0], sizes = [8, 3], strides = [1, 1]} : vector<8x5xf32> to vector<8x3xf32>
      %32 = vector.extract_strided_slice %30 {offsets = [0, 3], sizes = [8, 1], strides = [1, 1]} : vector<8x5xf32> to vector<8x1xf32>
      %33 = vector.extract_strided_slice %30 {offsets = [0, 4], sizes = [8, 1], strides = [1, 1]} : vector<8x5xf32> to vector<8x1xf32>
      %34 = vector.extract_strided_slice %31 {offsets = [0, 0], sizes = [8, 1], strides = [1, 1]} : vector<8x3xf32> to vector<8x1xf32>
      %c0_12 = arith.constant 0 : index
      %c0_13 = arith.constant 0 : index
      %35 = vector.load %arg9[%c0_12, %c0_13] : memref<3x128xf32, #tpu.memory_space<vmem>>, vector<1x128xf32>
      %36 = vector.broadcast %34 : vector<8x1xf32> to vector<8x128xf32>
      %37 = vector.broadcast %35 : vector<1x128xf32> to vector<8x128xf32>
      %38 = arith.mulf %36, %37 : vector<8x128xf32>
      %39 = vector.extract_strided_slice %31 {offsets = [0, 0], sizes = [8, 1], strides = [1, 1]} : vector<8x3xf32> to vector<8x1xf32>
      %c0_14 = arith.constant 0 : index
      %c0_15 = arith.constant 0 : index
      %40 = vector.load %arg14[%c0_14, %c0_15] : memref<3x128xf32, #tpu.memory_space<vmem>>, vector<1x128xf32>
      %41 = vector.broadcast %39 : vector<8x1xf32> to vector<8x128xf32>
      %42 = vector.broadcast %40 : vector<1x128xf32> to vector<8x128xf32>
      %43 = arith.mulf %41, %42 : vector<8x128xf32>
      %44 = vector.extract_strided_slice %31 {offsets = [0, 1], sizes = [8, 1], strides = [1, 1]} : vector<8x3xf32> to vector<8x1xf32>
      %c1_16 = arith.constant 1 : index
      %c0_17 = arith.constant 0 : index
      %45 = vector.load %arg9[%c1_16, %c0_17] : memref<3x128xf32, #tpu.memory_space<vmem>>, vector<1x128xf32>
      %46 = vector.broadcast %44 : vector<8x1xf32> to vector<8x128xf32>
      %47 = vector.broadcast %45 : vector<1x128xf32> to vector<8x128xf32>
      %48 = arith.mulf %46, %47 : vector<8x128xf32>
      %49 = arith.addf %38, %48 : vector<8x128xf32>
      %50 = vector.extract_strided_slice %31 {offsets = [0, 1], sizes = [8, 1], strides = [1, 1]} : vector<8x3xf32> to vector<8x1xf32>
      %c1_18 = arith.constant 1 : index
      %c0_19 = arith.constant 0 : index
      %51 = vector.load %arg14[%c1_18, %c0_19] : memref<3x128xf32, #tpu.memory_space<vmem>>, vector<1x128xf32>
      %52 = vector.broadcast %50 : vector<8x1xf32> to vector<8x128xf32>
      %53 = vector.broadcast %51 : vector<1x128xf32> to vector<8x128xf32>
      %54 = arith.mulf %52, %53 : vector<8x128xf32>
      %55 = arith.addf %43, %54 : vector<8x128xf32>
      %56 = vector.extract_strided_slice %31 {offsets = [0, 2], sizes = [8, 1], strides = [1, 1]} : vector<8x3xf32> to vector<8x1xf32>
      %c2 = arith.constant 2 : index
      %c0_20 = arith.constant 0 : index
      %57 = vector.load %arg9[%c2, %c0_20] : memref<3x128xf32, #tpu.memory_space<vmem>>, vector<1x128xf32>
      %58 = vector.broadcast %56 : vector<8x1xf32> to vector<8x128xf32>
      %59 = vector.broadcast %57 : vector<1x128xf32> to vector<8x128xf32>
      %60 = arith.mulf %58, %59 : vector<8x128xf32>
      %61 = arith.addf %49, %60 : vector<8x128xf32>
      %62 = vector.extract_strided_slice %31 {offsets = [0, 2], sizes = [8, 1], strides = [1, 1]} : vector<8x3xf32> to vector<8x1xf32>
      %c2_21 = arith.constant 2 : index
      %c0_22 = arith.constant 0 : index
      %63 = vector.load %arg14[%c2_21, %c0_22] : memref<3x128xf32, #tpu.memory_space<vmem>>, vector<1x128xf32>
      %64 = vector.broadcast %62 : vector<8x1xf32> to vector<8x128xf32>
      %65 = vector.broadcast %63 : vector<1x128xf32> to vector<8x128xf32>
      %66 = arith.mulf %64, %65 : vector<8x128xf32>
      %67 = arith.addf %55, %66 : vector<8x128xf32>
      %c0_23 = arith.constant 0 : index
      %c0_24 = arith.constant 0 : index
      %68 = vector.load %arg17[%c0_23, %c0_24] : memref<8x128xf32, #tpu.memory_space<vmem>>, vector<8x128xf32>
      %69 = vector.broadcast %32 : vector<8x1xf32> to vector<8x128xf32>
      %70 = arith.mulf %68, %69 : vector<8x128xf32>
      %c0_25 = arith.constant 0 : index
      %c0_26 = arith.constant 0 : index
      %71 = vector.load %arg8[%c0_25, %c0_26] : memref<1x128xf32, #tpu.memory_space<vmem>>, vector<1x128xf32>
      %72 = vector.broadcast %71 : vector<1x128xf32> to vector<8x128xf32>
      %73 = arith.addf %70, %72 : vector<8x128xf32>
      %74 = arith.addf %73, %61 : vector<8x128xf32>
      %c0_27 = arith.constant 0 : index
      %c0_28 = arith.constant 0 : index
      %75 = vector.load %arg18[%c0_27, %c0_28] : memref<8x128xf32, #tpu.memory_space<vmem>>, vector<8x128xf32>
      %76 = vector.broadcast %33 : vector<8x1xf32> to vector<8x128xf32>
      %77 = arith.mulf %75, %76 : vector<8x128xf32>
      %c0_29 = arith.constant 0 : index
      %c0_30 = arith.constant 0 : index
      %78 = vector.load %arg15[%c0_29, %c0_30] : memref<1x128xf32, #tpu.memory_space<vmem>>, vector<1x128xf32>
      %79 = vector.broadcast %78 : vector<1x128xf32> to vector<8x128xf32>
      %80 = arith.addf %77, %79 : vector<8x128xf32>
      %81 = arith.addf %80, %67 : vector<8x128xf32>
      %82 = arith.addf %74, %81 : vector<8x128xf32>
      %cst = arith.constant 5.000000e-01 : f32
      %83 = vector.broadcast %cst : f32 to vector<8x128xf32>
      %84 = arith.mulf %82, %83 : vector<8x128xf32>
      %c0_31 = arith.constant 0 : index
      %c0_32 = arith.constant 0 : index
      %85 = vector.load %arg16[%c0_31, %c0_32] : memref<8x128xf32, #tpu.memory_space<vmem>>, vector<8x128xf32>
      tpu.vector_store %arg16[%c0_31, %c0_32], %84 {strides = array<i32>} : memref<8x128xf32, #tpu.memory_space<vmem>>, vector<8x128xf32>,
    } else {
    }
    return
  }
  func.func @transform_0(%arg0: i32, %arg1: i32, %arg2: memref<2x1xi32, #tpu.memory_space<smem>>, %arg3: memref<2x1xi32, #tpu.memory_space<smem>>) -> (i32, i32) {
    %c0_i32 = arith.constant 0 : i32
    %c0_i32_0 = arith.constant 0 : i32
    return %arg1, %c0_i32 : i32, i32
  }
  func.func @transform_1(%arg0: i32, %arg1: i32, %arg2: memref<2x1xi32, #tpu.memory_space<smem>>, %arg3: memref<2x1xi32, #tpu.memory_space<smem>>) -> (i32, i32) {
    %c0_i32 = arith.constant 0 : i32
    %c0_i32_0 = arith.constant 0 : i32
    return %c0_i32, %arg1 : i32, i32
  }
  func.func @transform_2(%arg0: i32, %arg1: i32, %arg2: memref<2x1xi32, #tpu.memory_space<smem>>, %arg3: memref<2x1xi32, #tpu.memory_space<smem>>) -> (i32, i32) {
    %c0_i32 = arith.constant 0 : i32
    %c0_i32_0 = arith.constant 0 : i32
    return %arg0, %c0_i32 : i32, i32
  }
  func.func @transform_3(%arg0: i32, %arg1: i32, %arg2: memref<2x1xi32, #tpu.memory_space<smem>>, %arg3: memref<2x1xi32, #tpu.memory_space<smem>>) -> (i32, i32) {
    %c0_i32 = arith.constant 0 : i32
    %c0_i32_0 = arith.constant 0 : i32
    %c0_i32_1 = arith.constant 0 : i32
    return %c0_i32, %c0_i32_0 : i32, i32
  }
  func.func @transform_4(%arg0: i32, %arg1: i32, %arg2: memref<2x1xi32, #tpu.memory_space<smem>>, %arg3: memref<2x1xi32, #tpu.memory_space<smem>>) -> (i32, i32) {
    %c0_i32 = arith.constant 0 : i32
    %c0_i32_0 = arith.constant 0 : i32
    %c0_i32_1 = arith.constant 0 : i32
    return %c0_i32, %c0_i32_0 : i32, i32
  }
  func.func @transform_5(%arg0: i32, %arg1: i32, %arg2: memref<2x1xi32, #tpu.memory_space<smem>>, %arg3: memref<2x1xi32, #tpu.memory_space<smem>>) -> (i32, i32) {
    %c0_i32 = arith.constant 0 : i32
    %c0_i32_0 = arith.constant 0 : i32
    %c0_i32_1 = arith.constant 0 : i32
    return %c0_i32, %c0_i32_0 : i32, i32
  }
  func.func @transform_6(%arg0: i32, %arg1: i32, %arg2: memref<2x1xi32, #tpu.memory_space<smem>>, %arg3: memref<2x1xi32, #tpu.memory_space<smem>>) -> (i32, i32) {
    %c0_i32 = arith.constant 0 : i32
    %c0_i32_0 = arith.constant 0 : i32
    %c0_i32_1 = arith.constant 0 : i32
    return %c0_i32, %c0_i32_0 : i32, i32
  }
  func.func @transform_7(%arg0: i32, %arg1: i32, %arg2: memref<2x1xi32, #tpu.memory_space<smem>>, %arg3: memref<2x1xi32, #tpu.memory_space<smem>>) -> (i32, i32) {
    %c0_i32 = arith.constant 0 : i32
    %c0_i32_0 = arith.constant 0 : i32
    %c0_i32_1 = arith.constant 0 : i32
    return %c0_i32, %c0_i32_0 : i32, i32
  }
  func.func @transform_8(%arg0: i32, %arg1: i32, %arg2: memref<2x1xi32, #tpu.memory_space<smem>>, %arg3: memref<2x1xi32, #tpu.memory_space<smem>>) -> (i32, i32) {
    %c0_i32 = arith.constant 0 : i32
    %c0_i32_0 = arith.constant 0 : i32
    %c0_i32_1 = arith.constant 0 : i32
    return %c0_i32, %c0_i32_0 : i32, i32
  }
  func.func @transform_9(%arg0: i32, %arg1: i32, %arg2: memref<2x1xi32, #tpu.memory_space<smem>>, %arg3: memref<2x1xi32, #tpu.memory_space<smem>>) -> (i32, i32) {
    %c0_i32 = arith.constant 0 : i32
    %c0_i32_0 = arith.constant 0 : i32
    %c0_i32_1 = arith.constant 0 : i32
    return %c0_i32, %c0_i32_0 : i32, i32
  }
  func.func @transform_10(%arg0: i32, %arg1: i32, %arg2: memref<2x1xi32, #tpu.memory_space<smem>>, %arg3: memref<2x1xi32, #tpu.memory_space<smem>>) -> (i32, i32) {
    %c0_i32 = arith.constant 0 : i32
    %c0_i32_0 = arith.constant 0 : i32
    %c0_i32_1 = arith.constant 0 : i32
    return %c0_i32, %c0_i32_0 : i32, i32
  }
  func.func @transform_11(%arg0: i32, %arg1: i32, %arg2: memref<2x1xi32, #tpu.memory_space<smem>>, %arg3: memref<2x1xi32, #tpu.memory_space<smem>>) -> (i32, i32) {
    %c0_i32 = arith.constant 0 : i32
    %c0_i32_0 = arith.constant 0 : i32
    %c0_i32_1 = arith.constant 0 : i32
    return %c0_i32, %c0_i32_0 : i32, i32
  }
  func.func @transform_12(%arg0: i32, %arg1: i32, %arg2: memref<2x1xi32, #tpu.memory_space<smem>>, %arg3: memref<2x1xi32, #tpu.memory_space<smem>>) -> (i32, i32) {
    %c0_i32 = arith.constant 0 : i32
    %c0_i32_0 = arith.constant 0 : i32
    return %arg0, %c0_i32 : i32, i32
  }
}

</mosaic_0001>

<llo_original>
// kernel: tpu_custom_call.1
$region0: #{tpu_custom_call.1}
  #allocation0 [shape = 'u32[]', space=smem, size = 0x4, offset = 0x4, fixed_abs, tag = 'smem constant byte address 0x4 - core index']
  #allocation1 [shape = 'u32[144,128]{1,0:T(1,128)}', space=vmem, size = 0x12000, scoped, tag = 'internal scratch']
  #allocation2 [shape = 'f32[8,128]{1,0:T(8,128)}', space=vmem, size = 0x1000, scoped, tag = 'scratch operand']
  #allocation3 [shape = 'f32[8,128]{1,0:T(8,128)}', space=vmem, size = 0x1000, scoped, tag = 'scratch operand']
  #allocation4 [shape = 's32[1]{0}', space=sflag, size = 0x4, scoped, tag = 'scoped memory for tpu_custom_call.1']
  #allocation5 [shape = 'u8[1024]{0}', space=smem, size = 0x400, scoped, tag = 'prefetched SMEM operand 0']
  #allocation6 [shape = 'u8[1024]{0}', space=smem, size = 0x400, scoped, tag = 'prefetched SMEM operand 1']
  %s0 = inlined_call_operand.vmem [shape: s32[2,1], index: 0, kind: input, shape index: {}]
  %s1 = inlined_call_operand.vmem [shape: s32[2,1], index: 1, kind: input, shape index: {}]
  %s2 = inlined_call_operand.vmem [shape: f32[128,8], index: 2, kind: input, shape index: {}]
  %s3 = inlined_call_operand.vmem [shape: s32[2,128], index: 3, kind: input, shape index: {}]
  %s4 = inlined_call_operand.vmem [shape: f32[8,5], index: 4, kind: input, shape index: {}]
  %s5 = inlined_call_operand.vmem [shape: f32[3,128], index: 5, kind: input, shape index: {}]
  %s6 = inlined_call_operand.vmem [shape: f32[1,128], index: 6, kind: input, shape index: {}]
  %s7 = inlined_call_operand.vmem [shape: f32[3,128], index: 7, kind: input, shape index: {}]
  %s8 = inlined_call_operand.vmem [shape: f32[1,32], index: 8, kind: input, shape index: {}]
  %s9 = inlined_call_operand.vmem [shape: f32[1,32], index: 9, kind: input, shape index: {}]
  %s10 = inlined_call_operand.vmem [shape: bf16[32,384], index: 10, kind: input, shape index: {}]
  %s11 = inlined_call_operand.vmem [shape: f32[1,384], index: 11, kind: input, shape index: {}]
  %s12 = inlined_call_operand.vmem [shape: f32[3,128], index: 12, kind: input, shape index: {}]
  %s13 = inlined_call_operand.vmem [shape: f32[1,128], index: 13, kind: input, shape index: {}]
  %s14 = inlined_call_operand.hbm [shape: f32[8,128], index: 14, kind: output, shape index: {}]
  %s15 = sld [smem:[#allocation0]]
  $region74: #{tpu_custom_call.1} parent=0
    _
  %s17 = ssub.s32 1, %s15
  %s18 = scalar_select 0, %s17, %s15
  %s19 = sshll.u32 %s0, 4
  %s20 = int_to_ptr.vmem [resolvable:$true] %s19
  %22 = dma.vmem_to_smem %s20, 32, [#allocation5], [#allocation4]
  %s23 = sshll.u32 %s1, 4
  %s24 = int_to_ptr.vmem [resolvable:$true] %s23
  %26 = dma.vmem_to_smem %s24, 32, [#allocation6], [#allocation4]
  %27 = dma.done [#allocation4], 64
  %28 = sfence
  $region1: #{tpu_custom_call.1} parent=0
    #allocation7 [shape = 'u8[4096]{0}', space=vmem, size = 0x1000, scoped, tag = 'output window, operand 0, single buffered']
    #allocation8 [shape = 's32[1]{0}', space=sflag, size = 0x4, scoped, tag = 'scoped memory for tpu_custom_call.1']
    %29 = vsyncpa [#allocation8], 0
    // Predicated region
    $region2: #{tpu_custom_call.1} parent=1 // pred_check
      _
    $region3: #{tpu_custom_call.1} parent=1 // pred_check_branch
      %31 = sbr.rel (0) target = $region5
    $region4: #{tpu_custom_call.1} parent=1 // pred_region
      _
    $region5: #{tpu_custom_call.1} parent=1 // pred_fallthru
      _
    // Predicated region
    $region6: #{tpu_custom_call.1} parent=1 // pred_check
      _
    $region7: #{tpu_custom_call.1} parent=1 // pred_check_branch
      %33 = sbr.rel (0) target = $region9
    $region8: #{tpu_custom_call.1} parent=1 // pred_region
      _
    $region9: #{tpu_custom_call.1} parent=1 // pred_fallthru
      _
    // Predicated region
    $region10: #{tpu_custom_call.1} parent=1 // pred_check
      _
    $region11: #{tpu_custom_call.1} parent=1 // pred_check_branch
      %35 = sbr.rel (0) target = $region13
    $region12: #{tpu_custom_call.1} parent=1 // pred_region
      _
    $region13: #{tpu_custom_call.1} parent=1 // pred_fallthru
      _
    // Predicated region
    $region14: #{tpu_custom_call.1} parent=1 // pred_check
      _
    $region15: #{tpu_custom_call.1} parent=1 // pred_check_branch
      %37 = sbr.rel (0) target = $region17
    $region16: #{tpu_custom_call.1} parent=1 // pred_region
      _
    $region17: #{tpu_custom_call.1} parent=1 // pred_fallthru
      _
    // Predicated region
    $region18: #{tpu_custom_call.1} parent=1 // pred_check
      _
    $region19: #{tpu_custom_call.1} parent=1 // pred_check_branch
      %39 = sbr.rel (0) target = $region21
    $region20: #{tpu_custom_call.1} parent=1 // pred_region
      _
    $region21: #{tpu_custom_call.1} parent=1 // pred_fallthru
      _
    // Predicated region
    $region22: #{tpu_custom_call.1} parent=1 // pred_check
      _
    $region23: #{tpu_custom_call.1} parent=1 // pred_check_branch
      %41 = sbr.rel (0) target = $region25
    $region24: #{tpu_custom_call.1} parent=1 // pred_region
      _
    $region25: #{tpu_custom_call.1} parent=1 // pred_fallthru
      _
    // Predicated region
    $region26: #{tpu_custom_call.1} parent=1 // pred_check
      _
    $region27: #{tpu_custom_call.1} parent=1 // pred_check_branch
      %43 = sbr.rel (0) target = $region29
    $region28: #{tpu_custom_call.1} parent=1 // pred_region
      _
    $region29: #{tpu_custom_call.1} parent=1 // pred_fallthru
      _
    // Predicated region
    $region30: #{tpu_custom_call.1} parent=1 // pred_check
      _
    $region31: #{tpu_custom_call.1} parent=1 // pred_check_branch
      %45 = sbr.rel (0) target = $region33
    $region32: #{tpu_custom_call.1} parent=1 // pred_region
      _
    $region33: #{tpu_custom_call.1} parent=1 // pred_fallthru
      _
    // Predicated region
    $region34: #{tpu_custom_call.1} parent=1 // pred_check
      _
    $region35: #{tpu_custom_call.1} parent=1 // pred_check_branch
      %47 = sbr.rel (0) target = $region37
    $region36: #{tpu_custom_call.1} parent=1 // pred_region
      _
    $region37: #{tpu_custom_call.1} parent=1 // pred_fallthru
      _
    // Predicated region
    $region38: #{tpu_custom_call.1} parent=1 // pred_check
      _
    $region39: #{tpu_custom_call.1} parent=1 // pred_check_branch
      %49 = sbr.rel (0) target = $region41
    $region40: #{tpu_custom_call.1} parent=1 // pred_region
      _
    $region41: #{tpu_custom_call.1} parent=1 // pred_fallthru
      _
    // Predicated region
    $region42: #{tpu_custom_call.1} parent=1 // pred_check
      _
    $region43: #{tpu_custom_call.1} parent=1 // pred_check_branch
      %51 = sbr.rel (0) target = $region45
    $region44: #{tpu_custom_call.1} parent=1 // pred_region
      _
    $region45: #{tpu_custom_call.1} parent=1 // pred_fallthru
      _
    // Predicated region
    $region46: #{tpu_custom_call.1} parent=1 // pred_check
      _
    $region47: #{tpu_custom_call.1} parent=1 // pred_check_branch
      %53 = sbr.rel (0) target = $region49
    $region48: #{tpu_custom_call.1} parent=1 // pred_region
      _
    $region49: #{tpu_custom_call.1} parent=1 // pred_fallthru
      _
    %s55 = smul.u32 0, 8
    %s56 = sadd.s32 %s55, 8
    %p57 = scmp.eq.s32.totalorder 0, 0
    // Predicated region
    $region50: #{tpu_custom_call.1} parent=1 // pred_check
      %p58 = pneg %p57
    $region51: #{tpu_custom_call.1} parent=1 // pred_check_branch
      %60 = sbr.rel (%p58) target = $region53
    $region52: #{tpu_custom_call.1} parent=1 // pred_region
      %61 = vst [vmem:[#allocation2] sm:$0xff] 0.0
      %62 = vst [vmem:[#allocation3] sm:$0xff] 0.0
    $region53: #{tpu_custom_call.1} parent=1 // pred_fallthru
      _
    %s63 = sadd.s32 0, 1
    %s64 = smul.u32 %s63, 128
    %s65 = sadd.s32 %s64, 0
    %s66 = sld [smem:[#allocation5 + %s65]]
    %p67 = scmp.ge.s32.totalorder %s66, %s55
    %s68 = sld [smem:[#allocation5]]
    %p69 = scmp.lt.s32.totalorder %s68, %s56
    %p70 = pnand %p67, %p69
    %p71 = pneg %p70
    %s72 = sld [smem:[#allocation6 + %s65]]
    %p73 = scmp.ge.s32.totalorder %s72, %s55
    %s74 = sld [smem:[#allocation6]]
    %p75 = scmp.lt.s32.totalorder %s74, %s56
    %p76 = pnand %p73, %p75
    %p77 = pneg %p76
    %v78 = vlaneseq
    %v79 = vshrl.u32 %v78, 7
    %v80 = vstv %s55
    %v81 = vadd.s32 %v79, %v80
    %v82 = vld [vmem:[%s2] sm:$0xff]
    %v83 = vld [vmem:[%s2 + $0x8] sm:$0xff]
    %v84 = vld [vmem:[%s2 + $0x10] sm:$0xff]
    %v85 = vld [vmem:[%s2 + $0x18] sm:$0xff]
    %v86 = vld [vmem:[%s2 + $0x20] sm:$0xff]
    %v87 = vld [vmem:[%s2 + $0x28] sm:$0xff]
    %v88 = vld [vmem:[%s2 + $0x30] sm:$0xff]
    %v89 = vld [vmem:[%s2 + $0x38] sm:$0xff]
    %v90 = vld [vmem:[%s2 + $0x40] sm:$0xff]
    %v91 = vld [vmem:[%s2 + $0x48] sm:$0xff]
    %v92 = vld [vmem:[%s2 + $0x50] sm:$0xff]
    %v93 = vld [vmem:[%s2 + $0x58] sm:$0xff]
    %v94 = vld [vmem:[%s2 + $0x60] sm:$0xff]
    %v95 = vld [vmem:[%s2 + $0x68] sm:$0xff]
    %v96 = vld [vmem:[%s2 + $0x70] sm:$0xff]
    %v97 = vld [vmem:[%s2 + $0x78] sm:$0xff]
    // Predicated region
    $region54: #{tpu_custom_call.1} parent=1 // pred_check
      _
    $region55: #{tpu_custom_call.1} parent=1 // pred_check_branch
      %99 = sbr.rel (%p70) target = $region57
    $region56: #{tpu_custom_call.1} parent=1 // pred_region
      %v100 = vld [vmem:[%s5] sm:$0x1]
      %102 = vset.pattern.permute.xlu0 0
      %103 = vperm.xlu0 %102, %v82
      %v104 = vpop.permute.xlu0 %103
      %107 = vset.pattern.permute.xlu0 0
      %108 = vperm.xlu0 %107, %v83
      %v109 = vpop.permute.xlu0 %108
      %112 = vset.pattern.permute.xlu0 0
      %113 = vperm.xlu0 %112, %v84
      %v114 = vpop.permute.xlu0 %113
      %117 = vset.pattern.permute.xlu0 0
      %118 = vperm.xlu0 %117, %v85
      %v119 = vpop.permute.xlu0 %118
      %122 = vset.pattern.permute.xlu0 0
      %123 = vperm.xlu0 %122, %v86
      %v124 = vpop.permute.xlu0 %123
      %127 = vset.pattern.permute.xlu0 0
      %128 = vperm.xlu0 %127, %v87
      %v129 = vpop.permute.xlu0 %128
      %132 = vset.pattern.permute.xlu0 0
      %133 = vperm.xlu0 %132, %v88
      %v134 = vpop.permute.xlu0 %133
      %137 = vset.pattern.permute.xlu0 0
      %138 = vperm.xlu0 %137, %v89
      %v139 = vpop.permute.xlu0 %138
      %142 = vset.pattern.permute.xlu0 0
      %143 = vperm.xlu0 %142, %v90
      %v144 = vpop.permute.xlu0 %143
      %147 = vset.pattern.permute.xlu0 0
      %148 = vperm.xlu0 %147, %v91
      %v149 = vpop.permute.xlu0 %148
      %152 = vset.pattern.permute.xlu0 0
      %153 = vperm.xlu0 %152, %v92
      %v154 = vpop.permute.xlu0 %153
      %157 = vset.pattern.permute.xlu0 0
      %158 = vperm.xlu0 %157, %v93
      %v159 = vpop.permute.xlu0 %158
      %162 = vset.pattern.permute.xlu0 0
      %163 = vperm.xlu0 %162, %v94
      %v164 = vpop.permute.xlu0 %163
      %167 = vset.pattern.permute.xlu0 0
      %168 = vperm.xlu0 %167, %v95
      %v169 = vpop.permute.xlu0 %168
      %172 = vset.pattern.permute.xlu0 0
      %173 = vperm.xlu0 %172, %v96
      %v174 = vpop.permute.xlu0 %173
      %177 = vset.pattern.permute.xlu0 0
      %178 = vperm.xlu0 %177, %v97
      %v179 = vpop.permute.xlu0 %178
      %v181 = vlaneseq
      %v182 = vshrl.u32 %v181, 7
      %v183 = vsub.s32 0, %v182
      %v184 = vrot.slane %v100, %v183
      %v185 = vmul.f32 %v104, %v184
      %v186 = vmul.f32 %v109, %v184
      %v187 = vmul.f32 %v114, %v184
      %v188 = vmul.f32 %v119, %v184
      %v189 = vmul.f32 %v124, %v184
      %v190 = vmul.f32 %v129, %v184
      %v191 = vmul.f32 %v134, %v184
      %v192 = vmul.f32 %v139, %v184
      %v193 = vmul.f32 %v144, %v184
      %v194 = vmul.f32 %v149, %v184
      %v195 = vmul.f32 %v154, %v184
      %v196 = vmul.f32 %v159, %v184
      %v197 = vmul.f32 %v164, %v184
      %v198 = vmul.f32 %v169, %v184
      %v199 = vmul.f32 %v174, %v184
      %v200 = vmul.f32 %v179, %v184
      %v201 = vld [vmem:[%s5 + $0x1] sm:$0x1]
      %202 = vset.pattern.permute.xlu0 1
      %203 = vperm.xlu0 %202, %v82
      %v204 = vpop.permute.xlu0 %203
      %206 = vset.pattern.permute.xlu0 1
      %207 = vperm.xlu0 %206, %v83
      %v208 = vpop.permute.xlu0 %207
      %210 = vset.pattern.permute.xlu0 1
      %211 = vperm.xlu0 %210, %v84
      %v212 = vpop.permute.xlu0 %211
      %214 = vset.pattern.permute.xlu0 1
      %215 = vperm.xlu0 %214, %v85
      %v216 = vpop.permute.xlu0 %215
      %218 = vset.pattern.permute.xlu0 1
      %219 = vperm.xlu0 %218, %v86
      %v220 = vpop.permute.xlu0 %219
      %222 = vset.pattern.permute.xlu0 1
      %223 = vperm.xlu0 %222, %v87
      %v224 = vpop.permute.xlu0 %223
      %226 = vset.pattern.permute.xlu0 1
      %227 = vperm.xlu0 %226, %v88
      %v228 = vpop.permute.xlu0 %227
      %230 = vset.pattern.permute.xlu0 1
      %231 = vperm.xlu0 %230, %v89
      %v232 = vpop.permute.xlu0 %231
      %234 = vset.pattern.permute.xlu0 1
      %235 = vperm.xlu0 %234, %v90
      %v236 = vpop.permute.xlu0 %235
      %238 = vset.pattern.permute.xlu0 1
      %239 = vperm.xlu0 %238, %v91
      %v240 = vpop.permute.xlu0 %239
      %242 = vset.pattern.permute.xlu0 1
      %243 = vperm.xlu0 %242, %v92
      %v244 = vpop.permute.xlu0 %243
      %246 = vset.pattern.permute.xlu0 1
      %247 = vperm.xlu0 %246, %v93
      %v248 = vpop.permute.xlu0 %247
      %250 = vset.pattern.permute.xlu0 1
      %251 = vperm.xlu0 %250, %v94
      %v252 = vpop.permute.xlu0 %251
      %254 = vset.pattern.permute.xlu0 1
      %255 = vperm.xlu0 %254, %v95
      %v256 = vpop.permute.xlu0 %255
      %258 = vset.pattern.permute.xlu0 1
      %259 = vperm.xlu0 %258, %v96
      %v260 = vpop.permute.xlu0 %259
      %262 = vset.pattern.permute.xlu0 1
      %263 = vperm.xlu0 %262, %v97
      %v264 = vpop.permute.xlu0 %263
      %v266 = vlaneseq
      %v267 = vshrl.u32 %v266, 7
      %v268 = vsub.s32 0, %v267
      %v269 = vrot.slane %v201, %v268
      %v270 = vmul.f32 %v204, %v269
      %v271 = vmul.f32 %v208, %v269
      %v272 = vmul.f32 %v212, %v269
      %v273 = vmul.f32 %v216, %v269
      %v274 = vmul.f32 %v220, %v269
      %v275 = vmul.f32 %v224, %v269
      %v276 = vmul.f32 %v228, %v269
      %v277 = vmul.f32 %v232, %v269
      %v278 = vmul.f32 %v236, %v269
      %v279 = vmul.f32 %v240, %v269
      %v280 = vmul.f32 %v244, %v269
      %v281 = vmul.f32 %v248, %v269
      %v282 = vmul.f32 %v252, %v269
      %v283 = vmul.f32 %v256, %v269
      %v284 = vmul.f32 %v260, %v269
      %v285 = vmul.f32 %v264, %v269
      %v286 = vadd.f32 %v185, %v270
      %v287 = vadd.f32 %v186, %v271
      %v288 = vadd.f32 %v187, %v272
      %v289 = vadd.f32 %v188, %v273
      %v290 = vadd.f32 %v189, %v274
      %v291 = vadd.f32 %v190, %v275
      %v292 = vadd.f32 %v191, %v276
      %v293 = vadd.f32 %v192, %v277
      %v294 = vadd.f32 %v193, %v278
      %v295 = vadd.f32 %v194, %v279
      %v296 = vadd.f32 %v195, %v280
      %v297 = vadd.f32 %v196, %v281
      %v298 = vadd.f32 %v197, %v282
      %v299 = vadd.f32 %v198, %v283
      %v300 = vadd.f32 %v199, %v284
      %v301 = vadd.f32 %v200, %v285
      %v302 = vld [vmem:[%s5 + $0x2] sm:$0x1]
      %303 = vset.pattern.permute.xlu0 2
      %304 = vperm.xlu0 %303, %v82
      %v305 = vpop.permute.xlu0 %304
      %307 = vset.pattern.permute.xlu0 2
      %308 = vperm.xlu0 %307, %v83
      %v309 = vpop.permute.xlu0 %308
      %311 = vset.pattern.permute.xlu0 2
      %312 = vperm.xlu0 %311, %v84
      %v313 = vpop.permute.xlu0 %312
      %315 = vset.pattern.permute.xlu0 2
      %316 = vperm.xlu0 %315, %v85
      %v317 = vpop.permute.xlu0 %316
      %319 = vset.pattern.permute.xlu0 2
      %320 = vperm.xlu0 %319, %v86
      %v321 = vpop.permute.xlu0 %320
      %323 = vset.pattern.permute.xlu0 2
      %324 = vperm.xlu0 %323, %v87
      %v325 = vpop.permute.xlu0 %324
      %327 = vset.pattern.permute.xlu0 2
      %328 = vperm.xlu0 %327, %v88
      %v329 = vpop.permute.xlu0 %328
      %331 = vset.pattern.permute.xlu0 2
      %332 = vperm.xlu0 %331, %v89
      %v333 = vpop.permute.xlu0 %332
      %335 = vset.pattern.permute.xlu0 2
      %336 = vperm.xlu0 %335, %v90
      %v337 = vpop.permute.xlu0 %336
      %339 = vset.pattern.permute.xlu0 2
      %340 = vperm.xlu0 %339, %v91
      %v341 = vpop.permute.xlu0 %340
      %343 = vset.pattern.permute.xlu0 2
      %344 = vperm.xlu0 %343, %v92
      %v345 = vpop.permute.xlu0 %344
      %347 = vset.pattern.permute.xlu0 2
      %348 = vperm.xlu0 %347, %v93
      %v349 = vpop.permute.xlu0 %348
      %351 = vset.pattern.permute.xlu0 2
      %352 = vperm.xlu0 %351, %v94
      %v353 = vpop.permute.xlu0 %352
      %355 = vset.pattern.permute.xlu0 2
      %356 = vperm.xlu0 %355, %v95
      %v357 = vpop.permute.xlu0 %356
      %359 = vset.pattern.permute.xlu0 2
      %360 = vperm.xlu0 %359, %v96
      %v361 = vpop.permute.xlu0 %360
      %363 = vset.pattern.permute.xlu0 2
      %364 = vperm.xlu0 %363, %v97
      %v365 = vpop.permute.xlu0 %364
      %v367 = vlaneseq
      %v368 = vshrl.u32 %v367, 7
      %v369 = vsub.s32 0, %v368
      %v370 = vrot.slane %v302, %v369
      %v371 = vmul.f32 %v305, %v370
      %v372 = vmul.f32 %v309, %v370
      %v373 = vmul.f32 %v313, %v370
      %v374 = vmul.f32 %v317, %v370
      %v375 = vmul.f32 %v321, %v370
      %v376 = vmul.f32 %v325, %v370
      %v377 = vmul.f32 %v329, %v370
      %v378 = vmul.f32 %v333, %v370
      %v379 = vmul.f32 %v337, %v370
      %v380 = vmul.f32 %v341, %v370
      %v381 = vmul.f32 %v345, %v370
      %v382 = vmul.f32 %v349, %v370
      %v383 = vmul.f32 %v353, %v370
      %v384 = vmul.f32 %v357, %v370
      %v385 = vmul.f32 %v361, %v370
      %v386 = vmul.f32 %v365, %v370
      %v387 = vadd.f32 %v286, %v371
      %v388 = vadd.f32 %v287, %v372
      %v389 = vadd.f32 %v288, %v373
      %v390 = vadd.f32 %v289, %v374
      %v391 = vadd.f32 %v290, %v375
      %v392 = vadd.f32 %v291, %v376
      %v393 = vadd.f32 %v292, %v377
      %v394 = vadd.f32 %v293, %v378
      %v395 = vadd.f32 %v294, %v379
      %v396 = vadd.f32 %v295, %v380
      %v397 = vadd.f32 %v296, %v381
      %v398 = vadd.f32 %v297, %v382
      %v399 = vadd.f32 %v298, %v383
      %v400 = vadd.f32 %v299, %v384
      %v401 = vadd.f32 %v300, %v385
      %v402 = vadd.f32 %v301, %v386
      %v403 = vld [vmem:[%s3] sm:$0x1]
      %v404 = vlaneseq
      %v405 = vshrl.u32 %v404, 7
      %v406 = vsub.s32 0, %v405
      %v407 = vrot.slane %v403, %v406
      %vm408 = vcmp.eq.s32.totalorder %v407, %v81
      %v409 = vsel %vm408, 1, 0
      %v410 = vcvt.s32.f32 %v409
      %v411 = vpack.c.bf16 %v410, %v410
      %v412 = vld [vmem:[#allocation2] sm:$0xff]
      %v413 = vpack.c.bf16 %v388, %v387
      %v414 = vpack.c.bf16 %v390, %v389
      %v415 = vpack.c.bf16 %v392, %v391
      %v416 = vpack.c.bf16 %v394, %v393
      %v417 = vpack.c.bf16 %v396, %v395
      %v418 = vpack.c.bf16 %v398, %v397
      %v419 = vpack.c.bf16 %v400, %v399
      %v420 = vpack.c.bf16 %v402, %v401
      %421 = vmatprep.subr.bf16.mxu0 0
      %422 = vmatpush1.bf16.msra.mxu0 %v413
      %423 = vmatprep.subr.bf16.mxu0 0
      %424 = vmatpush1.bf16.msra.mxu0 %v414
      %425 = vmatprep.subr.bf16.mxu0 0
      %426 = vmatpush1.bf16.msra.mxu0 %v415
      %427 = vmatprep.subr.bf16.mxu0 0
      %428 = vmatpush1.bf16.msra.mxu0 %v416
      %429 = vmatprep.subr.bf16.mxu0 0
      %430 = vmatpush1.bf16.msra.mxu0 %v417
      %431 = vmatprep.subr.bf16.mxu0 0
      %432 = vmatpush1.bf16.msra.mxu0 %v418
      %433 = vmatprep.subr.bf16.mxu0 0
      %434 = vmatpush1.bf16.msra.mxu0 %v419
      %435 = vmatprep.subr.bf16.mxu0 0
      %436 = vmatpush1.bf16.msra.mxu0 %v420
      %437 = vmatprep.subr.bf16.mxu0 0
      %438 = vmatpush1.bf16.msra.mxu0 0
      %439 = vmatprep.subr.bf16.mxu0 0
      %440 = vmatpush1.bf16.msra.mxu0 0
      %441 = vmatprep.subr.bf16.mxu0 0
      %442 = vmatpush1.bf16.msra.mxu0 0
      %443 = vmatprep.subr.bf16.mxu0 0
      %444 = vmatpush1.bf16.msra.mxu0 0
      %445 = vmatprep.subr.bf16.mxu0 0
      %446 = vmatpush1.bf16.msra.mxu0 0
      %447 = vmatprep.subr.bf16.mxu0 0
      %448 = vmatpush1.bf16.msra.mxu0 0
      %449 = vmatprep.subr.bf16.mxu0 0
      %450 = vmatpush1.bf16.msra.mxu0 0
      %451 = vmatprep.subr.bf16.mxu0 0
      %452 = vmatpush1.bf16.msra.mxu0 0
      %453 = vmatprep.mubr.bf16.mxu0 0
      %454 = vmatmul.mubr.bf16.gmra.mrb[0].mxu0 %v411
      %v455 = vpop.f32.mrb[0].mxu0
      %v456 = vadd.f32 0.0, %v455
      %v457 = vpop.f32.mrb[0].mxu0
      %v458 = vpop.f32.mrb[0].mxu0
      %v459 = vpop.f32.mrb[0].mxu0
      %460 = vdwg.mxu0
      %v461 = vadd.f32 %v412, %v456
      %462 = vst [vmem:[#allocation2] sm:$0xff] %v461
    $region57: #{tpu_custom_call.1} parent=1 // pred_fallthru
      _
    // Predicated region
    $region58: #{tpu_custom_call.1} parent=1 // pred_check
      _
    $region59: #{tpu_custom_call.1} parent=1 // pred_check_branch
      %464 = sbr.rel (%p76) target = $region61
    $region60: #{tpu_custom_call.1} parent=1 // pred_region
      %v465 = vld [vmem:[%s8] sm:$0x1]
      %467 = vset.pattern.permute.xlu0 6
      %468 = vperm.xlu0 %467, %v82
      %v469 = vpop.permute.xlu0 %468
      %472 = vset.pattern.permute.xlu0 6
      %473 = vperm.xlu0 %472, %v83
      %v474 = vpop.permute.xlu0 %473
      %477 = vset.pattern.permute.xlu0 6
      %478 = vperm.xlu0 %477, %v84
      %v479 = vpop.permute.xlu0 %478
      %482 = vset.pattern.permute.xlu0 6
      %483 = vperm.xlu0 %482, %v85
      %v484 = vpop.permute.xlu0 %483
      %487 = vset.pattern.permute.xlu0 6
      %488 = vperm.xlu0 %487, %v86
      %v489 = vpop.permute.xlu0 %488
      %492 = vset.pattern.permute.xlu0 6
      %493 = vperm.xlu0 %492, %v87
      %v494 = vpop.permute.xlu0 %493
      %497 = vset.pattern.permute.xlu0 6
      %498 = vperm.xlu0 %497, %v88
      %v499 = vpop.permute.xlu0 %498
      %502 = vset.pattern.permute.xlu0 6
      %503 = vperm.xlu0 %502, %v89
      %v504 = vpop.permute.xlu0 %503
      %507 = vset.pattern.permute.xlu0 6
      %508 = vperm.xlu0 %507, %v90
      %v509 = vpop.permute.xlu0 %508
      %512 = vset.pattern.permute.xlu0 6
      %513 = vperm.xlu0 %512, %v91
      %v514 = vpop.permute.xlu0 %513
      %517 = vset.pattern.permute.xlu0 6
      %518 = vperm.xlu0 %517, %v92
      %v519 = vpop.permute.xlu0 %518
      %522 = vset.pattern.permute.xlu0 6
      %523 = vperm.xlu0 %522, %v93
      %v524 = vpop.permute.xlu0 %523
      %527 = vset.pattern.permute.xlu0 6
      %528 = vperm.xlu0 %527, %v94
      %v529 = vpop.permute.xlu0 %528
      %532 = vset.pattern.permute.xlu0 6
      %533 = vperm.xlu0 %532, %v95
      %v534 = vpop.permute.xlu0 %533
      %537 = vset.pattern.permute.xlu0 6
      %538 = vperm.xlu0 %537, %v96
      %v539 = vpop.permute.xlu0 %538
      %542 = vset.pattern.permute.xlu0 6
      %543 = vperm.xlu0 %542, %v97
      %v544 = vpop.permute.xlu0 %543
      %v547 = vlaneseq
      %v548 = vshrl.u32 %v547, 7
      %v549 = vsub.s32 0, %v548
      %v550 = vrot.slane %v465, %v549
      %v552 = vmul.f32 %v469, %v550
      %v553 = vmul.f32 %v474, %v550
      %v554 = vmul.f32 %v479, %v550
      %v555 = vmul.f32 %v484, %v550
      %v556 = vmul.f32 %v489, %v550
      %v557 = vmul.f32 %v494, %v550
      %v558 = vmul.f32 %v499, %v550
      %v559 = vmul.f32 %v504, %v550
      %v560 = vmul.f32 %v509, %v550
      %v561 = vmul.f32 %v514, %v550
      %v562 = vmul.f32 %v519, %v550
      %v563 = vmul.f32 %v524, %v550
      %v564 = vmul.f32 %v529, %v550
      %v565 = vmul.f32 %v534, %v550
      %v566 = vmul.f32 %v539, %v550
      %v567 = vmul.f32 %v544, %v550
      %v568 = vld [vmem:[%s9] sm:$0x1]
      %v570 = vlaneseq
      %v571 = vshrl.u32 %v570, 7
      %v572 = vsub.s32 0, %v571
      %v573 = vrot.slane %v568, %v572
      %v575 = vadd.f32 %v552, %v573
      %v576 = vadd.f32 %v553, %v573
      %v577 = vadd.f32 %v554, %v573
      %v578 = vadd.f32 %v555, %v573
      %v579 = vadd.f32 %v556, %v573
      %v580 = vadd.f32 %v557, %v573
      %v581 = vadd.f32 %v558, %v573
      %v582 = vadd.f32 %v559, %v573
      %v583 = vadd.f32 %v560, %v573
      %v584 = vadd.f32 %v561, %v573
      %v585 = vadd.f32 %v562, %v573
      %v586 = vadd.f32 %v563, %v573
      %v587 = vadd.f32 %v564, %v573
      %v588 = vadd.f32 %v565, %v573
      %v589 = vadd.f32 %v566, %v573
      %v590 = vadd.f32 %v567, %v573
      %v591 = vmax.f32 %v575, 0.0
      %v592 = vmax.f32 %v576, 0.0
      %v593 = vmax.f32 %v577, 0.0
      %v594 = vmax.f32 %v578, 0.0
      %v595 = vmax.f32 %v579, 0.0
      %v596 = vmax.f32 %v580, 0.0
      %v597 = vmax.f32 %v581, 0.0
      %v598 = vmax.f32 %v582, 0.0
      %v599 = vmax.f32 %v583, 0.0
      %v600 = vmax.f32 %v584, 0.0
      %v601 = vmax.f32 %v585, 0.0
      %v602 = vmax.f32 %v586, 0.0
      %v603 = vmax.f32 %v587, 0.0
      %v604 = vmax.f32 %v588, 0.0
      %v605 = vmax.f32 %v589, 0.0
      %v606 = vmax.f32 %v590, 0.0
      %v607 = vpack.c.bf16 %v592, %v591
      %v608 = vpack.c.bf16 %v594, %v593
      %v609 = vpack.c.bf16 %v596, %v595
      %v610 = vpack.c.bf16 %v598, %v597
      %v611 = vpack.c.bf16 %v600, %v599
      %v612 = vpack.c.bf16 %v602, %v601
      %v613 = vpack.c.bf16 %v604, %v603
      %v614 = vpack.c.bf16 %v606, %v605
      %v615 = vld [vmem:[%s10] sm:$0xf]
      %v616 = vld [vmem:[%s10 + $0xc] sm:$0xf]
      %v617 = vld [vmem:[%s10 + $0x18] sm:$0xf]
      %v618 = vld [vmem:[%s10 + $0x24] sm:$0xf]
      %v619 = vld [vmem:[%s11] sm:$0x1]
      %v621 = vlaneseq
      %v622 = vshrl.u32 %v621, 7
      %v623 = vsub.s32 0, %v622
      %v624 = vrot.slane %v619, %v623
      %v630 = vunpack.c.l.b16 %v615
      %v631 = vunpack.c.l.b16 %v616
      %v632 = vunpack.c.l.b16 %v617
      %v633 = vunpack.c.l.b16 %v618
      %v634 = vpack.c.b16 %v631, %v630
      %v635 = vpack.c.b16 %v633, %v632
      %vm638 = vcmask 261120
      %v640 = vsel %vm638, %v607, 0
      %v643 = vsel %vm638, %v608, 0
      %v646 = vsel %vm638, %v609, 0
      %v649 = vsel %vm638, %v610, 0
      %v652 = vsel %vm638, %v611, 0
      %v655 = vsel %vm638, %v612, 0
      %v658 = vsel %vm638, %v613, 0
      %v661 = vsel %vm638, %v614, 0
      %663 = vmatprep.subr.bf16.mxu0 0
      %664 = vmatpush1.bf16.msra.mxu0 %v634
      %665 = vmatprep.subr.bf16.mxu0 0
      %666 = vmatpush1.bf16.msra.mxu0 %v635
      %667 = vmatprep.subr.bf16.mxu0 0
      %668 = vmatpush1.bf16.msra.mxu0 0
      %669 = vmatprep.subr.bf16.mxu0 0
      %670 = vmatpush1.bf16.msra.mxu0 0
      %671 = vmatprep.subr.bf16.mxu0 0
      %672 = vmatpush1.bf16.msra.mxu0 0
      %673 = vmatprep.subr.bf16.mxu0 0
      %674 = vmatpush1.bf16.msra.mxu0 0
      %675 = vmatprep.subr.bf16.mxu0 0
      %676 = vmatpush1.bf16.msra.mxu0 0
      %677 = vmatprep.subr.bf16.mxu0 0
      %678 = vmatpush1.bf16.msra.mxu0 0
      %679 = vmatprep.subr.bf16.mxu0 0
      %680 = vmatpush1.bf16.msra.mxu0 0
      %681 = vmatprep.subr.bf16.mxu0 0
      %682 = vmatpush1.bf16.msra.mxu0 0
      %683 = vmatprep.subr.bf16.mxu0 0
      %684 = vmatpush1.bf16.msra.mxu0 0
      %685 = vmatprep.subr.bf16.mxu0 0
      %686 = vmatpush1.bf16.msra.mxu0 0
      %687 = vmatprep.subr.bf16.mxu0 0
      %688 = vmatpush1.bf16.msra.mxu0 0
      %689 = vmatprep.subr.bf16.mxu0 0
      %690 = vmatpush1.bf16.msra.mxu0 0
      %691 = vmatprep.subr.bf16.mxu0 0
      %692 = vmatpush1.bf16.msra.mxu0 0
      %693 = vmatprep.subr.bf16.mxu0 0
      %694 = vmatpush1.bf16.msra.mxu0 0
      %695 = vmatprep.mubr.bf16.mxu0 0
      %696 = vmatmul.mubr.bf16.gmra.mrb[0].mxu0 %v640
      %v697 = vpop.f32.mrb[0].mxu0
      %v698 = vadd.f32 %v624, %v697
      %v699 = vpop.f32.mrb[0].mxu0
      %v700 = vpop.f32.mrb[0].mxu0
      %v701 = vadd.f32 %v624, %v700
      %v702 = vpop.f32.mrb[0].mxu0
      %703 = vmatprep.mubr.bf16.mxu0 0
      %704 = vmatmul.mubr.bf16.gmra.mrb[0].mxu0 %v643
      %v705 = vpop.f32.mrb[0].mxu0
      %v706 = vadd.f32 %v624, %v705
      %v707 = vpop.f32.mrb[0].mxu0
      %v708 = vpop.f32.mrb[0].mxu0
      %v709 = vadd.f32 %v624, %v708
      %v710 = vpop.f32.mrb[0].mxu0
      %711 = vmatprep.mubr.bf16.mxu0 0
      %712 = vmatmul.mubr.bf16.gmra.mrb[0].mxu0 %v646
      %v713 = vpop.f32.mrb[0].mxu0
      %v714 = vadd.f32 %v624, %v713
      %v715 = vpop.f32.mrb[0].mxu0
      %v716 = vpop.f32.mrb[0].mxu0
      %v717 = vadd.f32 %v624, %v716
      %v718 = vpop.f32.mrb[0].mxu0
      %719 = vmatprep.mubr.bf16.mxu0 0
      %720 = vmatmul.mubr.bf16.gmra.mrb[0].mxu0 %v649
      %v721 = vpop.f32.mrb[0].mxu0
      %v722 = vadd.f32 %v624, %v721
      %v723 = vpop.f32.mrb[0].mxu0
      %v724 = vpop.f32.mrb[0].mxu0
      %v725 = vadd.f32 %v624, %v724
      %v726 = vpop.f32.mrb[0].mxu0
      %727 = vmatprep.mubr.bf16.mxu0 0
      %728 = vmatmul.mubr.bf16.gmra.mrb[0].mxu0 %v652
      %v729 = vpop.f32.mrb[0].mxu0
      %v730 = vadd.f32 %v624, %v729
      %v731 = vpop.f32.mrb[0].mxu0
      %v732 = vpop.f32.mrb[0].mxu0
      %v733 = vadd.f32 %v624, %v732
      %v734 = vpop.f32.mrb[0].mxu0
      %735 = vmatprep.mubr.bf16.mxu0 0
      %736 = vmatmul.mubr.bf16.gmra.mrb[0].mxu0 %v655
      %v737 = vpop.f32.mrb[0].mxu0
      %v738 = vadd.f32 %v624, %v737
      %v739 = vpop.f32.mrb[0].mxu0
      %v740 = vpop.f32.mrb[0].mxu0
      %v741 = vadd.f32 %v624, %v740
      %v742 = vpop.f32.mrb[0].mxu0
      %743 = vmatprep.mubr.bf16.mxu0 0
      %744 = vmatmul.mubr.bf16.gmra.mrb[0].mxu0 %v658
      %v745 = vpop.f32.mrb[0].mxu0
      %v746 = vadd.f32 %v624, %v745
      %v747 = vpop.f32.mrb[0].mxu0
      %v748 = vpop.f32.mrb[0].mxu0
      %v749 = vadd.f32 %v624, %v748
      %v750 = vpop.f32.mrb[0].mxu0
      %751 = vmatprep.mubr.bf16.mxu0 0
      %752 = vmatmul.mubr.bf16.gmra.mrb[0].mxu0 %v661
      %v753 = vpop.f32.mrb[0].mxu0
      %v754 = vadd.f32 %v624, %v753
      %v755 = vpop.f32.mrb[0].mxu0
      %v756 = vpop.f32.mrb[0].mxu0
      %v757 = vadd.f32 %v624, %v756
      %v758 = vpop.f32.mrb[0].mxu0
      %759 = vdwg.mxu0
      %760 = vset.pattern.permute.xlu0 3
      %761 = vperm.xlu0 %760, %v82
      %v762 = vpop.permute.xlu0 %761
      %764 = vset.pattern.permute.xlu0 3
      %765 = vperm.xlu0 %764, %v83
      %v766 = vpop.permute.xlu0 %765
      %768 = vset.pattern.permute.xlu0 3
      %769 = vperm.xlu0 %768, %v84
      %v770 = vpop.permute.xlu0 %769
      %772 = vset.pattern.permute.xlu0 3
      %773 = vperm.xlu0 %772, %v85
      %v774 = vpop.permute.xlu0 %773
      %776 = vset.pattern.permute.xlu0 3
      %777 = vperm.xlu0 %776, %v86
      %v778 = vpop.permute.xlu0 %777
      %780 = vset.pattern.permute.xlu0 3
      %781 = vperm.xlu0 %780, %v87
      %v782 = vpop.permute.xlu0 %781
      %784 = vset.pattern.permute.xlu0 3
      %785 = vperm.xlu0 %784, %v88
      %v786 = vpop.permute.xlu0 %785
      %788 = vset.pattern.permute.xlu0 3
      %789 = vperm.xlu0 %788, %v89
      %v790 = vpop.permute.xlu0 %789
      %792 = vset.pattern.permute.xlu0 3
      %793 = vperm.xlu0 %792, %v90
      %v794 = vpop.permute.xlu0 %793
      %796 = vset.pattern.permute.xlu0 3
      %797 = vperm.xlu0 %796, %v91
      %v798 = vpop.permute.xlu0 %797
      %800 = vset.pattern.permute.xlu0 3
      %801 = vperm.xlu0 %800, %v92
      %v802 = vpop.permute.xlu0 %801
      %804 = vset.pattern.permute.xlu0 3
      %805 = vperm.xlu0 %804, %v93
      %v806 = vpop.permute.xlu0 %805
      %808 = vset.pattern.permute.xlu0 3
      %809 = vperm.xlu0 %808, %v94
      %v810 = vpop.permute.xlu0 %809
      %812 = vset.pattern.permute.xlu0 3
      %813 = vperm.xlu0 %812, %v95
      %v814 = vpop.permute.xlu0 %813
      %816 = vset.pattern.permute.xlu0 3
      %817 = vperm.xlu0 %816, %v96
      %v818 = vpop.permute.xlu0 %817
      %820 = vset.pattern.permute.xlu0 3
      %821 = vperm.xlu0 %820, %v97
      %v822 = vpop.permute.xlu0 %821
      %v824 = vmul.f32 %v762, %v698
      %v825 = vmul.f32 %v766, %v701
      %v826 = vmul.f32 %v770, %v706
      %v827 = vmul.f32 %v774, %v709
      %v828 = vmul.f32 %v778, %v714
      %v829 = vmul.f32 %v782, %v717
      %v830 = vmul.f32 %v786, %v722
      %v831 = vmul.f32 %v790, %v725
      %v832 = vmul.f32 %v794, %v730
      %v833 = vmul.f32 %v798, %v733
      %v834 = vmul.f32 %v802, %v738
      %v835 = vmul.f32 %v806, %v741
      %v836 = vmul.f32 %v810, %v746
      %v837 = vmul.f32 %v814, %v749
      %v838 = vmul.f32 %v818, %v754
      %v839 = vmul.f32 %v822, %v757
      %v840 = vld [vmem:[%s10 + $0x4] sm:$0xf]
      %v841 = vld [vmem:[%s10 + $0x10] sm:$0xf]
      %v842 = vld [vmem:[%s10 + $0x1c] sm:$0xf]
      %v843 = vld [vmem:[%s10 + $0x28] sm:$0xf]
      %v844 = vld [vmem:[%s11 + $0x1] sm:$0x1]
      %v846 = vlaneseq
      %v847 = vshrl.u32 %v846, 7
      %v848 = vsub.s32 0, %v847
      %v849 = vrot.slane %v844, %v848
      %v855 = vunpack.c.l.b16 %v840
      %v856 = vunpack.c.l.b16 %v841
      %v857 = vunpack.c.l.b16 %v842
      %v858 = vunpack.c.l.b16 %v843
      %v859 = vpack.c.b16 %v856, %v855
      %v860 = vpack.c.b16 %v858, %v857
      %863 = vmatprep.subr.bf16.mxu0 0
      %864 = vmatpush1.bf16.msra.mxu0 %v859
      %865 = vmatprep.subr.bf16.mxu0 0
      %866 = vmatpush1.bf16.msra.mxu0 %v860
      %867 = vmatprep.subr.bf16.mxu0 0
      %868 = vmatpush1.bf16.msra.mxu0 0
      %869 = vmatprep.subr.bf16.mxu0 0
      %870 = vmatpush1.bf16.msra.mxu0 0
      %871 = vmatprep.subr.bf16.mxu0 0
      %872 = vmatpush1.bf16.msra.mxu0 0
      %873 = vmatprep.subr.bf16.mxu0 0
      %874 = vmatpush1.bf16.msra.mxu0 0
      %875 = vmatprep.subr.bf16.mxu0 0
      %876 = vmatpush1.bf16.msra.mxu0 0
      %877 = vmatprep.subr.bf16.mxu0 0
      %878 = vmatpush1.bf16.msra.mxu0 0
      %879 = vmatprep.subr.bf16.mxu0 0
      %880 = vmatpush1.bf16.msra.mxu0 0
      %881 = vmatprep.subr.bf16.mxu0 0
      %882 = vmatpush1.bf16.msra.mxu0 0
      %883 = vmatprep.subr.bf16.mxu0 0
      %884 = vmatpush1.bf16.msra.mxu0 0
      %885 = vmatprep.subr.bf16.mxu0 0
      %886 = vmatpush1.bf16.msra.mxu0 0
      %887 = vmatprep.subr.bf16.mxu0 0
      %888 = vmatpush1.bf16.msra.mxu0 0
      %889 = vmatprep.subr.bf16.mxu0 0
      %890 = vmatpush1.bf16.msra.mxu0 0
      %891 = vmatprep.subr.bf16.mxu0 0
      %892 = vmatpush1.bf16.msra.mxu0 0
      %893 = vmatprep.subr.bf16.mxu0 0
      %894 = vmatpush1.bf16.msra.mxu0 0
      %895 = vmatprep.mubr.bf16.mxu0 0
      %896 = vmatmul.mubr.bf16.gmra.mrb[0].mxu0 %v640
      %v897 = vpop.f32.mrb[0].mxu0
      %v898 = vadd.f32 %v849, %v897
      %v899 = vpop.f32.mrb[0].mxu0
      %v900 = vpop.f32.mrb[0].mxu0
      %v901 = vadd.f32 %v849, %v900
      %v902 = vpop.f32.mrb[0].mxu0
      %903 = vmatprep.mubr.bf16.mxu0 0
      %904 = vmatmul.mubr.bf16.gmra.mrb[0].mxu0 %v643
      %v905 = vpop.f32.mrb[0].mxu0
      %v906 = vadd.f32 %v849, %v905
      %v907 = vpop.f32.mrb[0].mxu0
      %v908 = vpop.f32.mrb[0].mxu0
      %v909 = vadd.f32 %v849, %v908
      %v910 = vpop.f32.mrb[0].mxu0
      %911 = vmatprep.mubr.bf16.mxu0 0
      %912 = vmatmul.mubr.bf16.gmra.mrb[0].mxu0 %v646
      %v913 = vpop.f32.mrb[0].mxu0
      %v914 = vadd.f32 %v849, %v913
      %v915 = vpop.f32.mrb[0].mxu0
      %v916 = vpop.f32.mrb[0].mxu0
      %v917 = vadd.f32 %v849, %v916
      %v918 = vpop.f32.mrb[0].mxu0
      %919 = vmatprep.mubr.bf16.mxu0 0
      %920 = vmatmul.mubr.bf16.gmra.mrb[0].mxu0 %v649
      %v921 = vpop.f32.mrb[0].mxu0
      %v922 = vadd.f32 %v849, %v921
      %v923 = vpop.f32.mrb[0].mxu0
      %v924 = vpop.f32.mrb[0].mxu0
      %v925 = vadd.f32 %v849, %v924
      %v926 = vpop.f32.mrb[0].mxu0
      %927 = vmatprep.mubr.bf16.mxu0 0
      %928 = vmatmul.mubr.bf16.gmra.mrb[0].mxu0 %v652
      %v929 = vpop.f32.mrb[0].mxu0
      %v930 = vadd.f32 %v849, %v929
      %v931 = vpop.f32.mrb[0].mxu0
      %v932 = vpop.f32.mrb[0].mxu0
      %v933 = vadd.f32 %v849, %v932
      %v934 = vpop.f32.mrb[0].mxu0
      %935 = vmatprep.mubr.bf16.mxu0 0
      %936 = vmatmul.mubr.bf16.gmra.mrb[0].mxu0 %v655
      %v937 = vpop.f32.mrb[0].mxu0
      %v938 = vadd.f32 %v849, %v937
      %v939 = vpop.f32.mrb[0].mxu0
      %v940 = vpop.f32.mrb[0].mxu0
      %v941 = vadd.f32 %v849, %v940
      %v942 = vpop.f32.mrb[0].mxu0
      %943 = vmatprep.mubr.bf16.mxu0 0
      %944 = vmatmul.mubr.bf16.gmra.mrb[0].mxu0 %v658
      %v945 = vpop.f32.mrb[0].mxu0
      %v946 = vadd.f32 %v849, %v945
      %v947 = vpop.f32.mrb[0].mxu0
      %v948 = vpop.f32.mrb[0].mxu0
      %v949 = vadd.f32 %v849, %v948
      %v950 = vpop.f32.mrb[0].mxu0
      %951 = vmatprep.mubr.bf16.mxu0 0
      %952 = vmatmul.mubr.bf16.gmra.mrb[0].mxu0 %v661
      %v953 = vpop.f32.mrb[0].mxu0
      %v954 = vadd.f32 %v849, %v953
      %v955 = vpop.f32.mrb[0].mxu0
      %v956 = vpop.f32.mrb[0].mxu0
      %v957 = vadd.f32 %v849, %v956
      %v958 = vpop.f32.mrb[0].mxu0
      %959 = vdwg.mxu0
      %960 = vset.pattern.permute.xlu0 4
      %961 = vperm.xlu0 %960, %v82
      %v962 = vpop.permute.xlu0 %961
      %964 = vset.pattern.permute.xlu0 4
      %965 = vperm.xlu0 %964, %v83
      %v966 = vpop.permute.xlu0 %965
      %968 = vset.pattern.permute.xlu0 4
      %969 = vperm.xlu0 %968, %v84
      %v970 = vpop.permute.xlu0 %969
      %972 = vset.pattern.permute.xlu0 4
      %973 = vperm.xlu0 %972, %v85
      %v974 = vpop.permute.xlu0 %973
      %976 = vset.pattern.permute.xlu0 4
      %977 = vperm.xlu0 %976, %v86
      %v978 = vpop.permute.xlu0 %977
      %980 = vset.pattern.permute.xlu0 4
      %981 = vperm.xlu0 %980, %v87
      %v982 = vpop.permute.xlu0 %981
      %984 = vset.pattern.permute.xlu0 4
      %985 = vperm.xlu0 %984, %v88
      %v986 = vpop.permute.xlu0 %985
      %988 = vset.pattern.permute.xlu0 4
      %989 = vperm.xlu0 %988, %v89
      %v990 = vpop.permute.xlu0 %989
      %992 = vset.pattern.permute.xlu0 4
      %993 = vperm.xlu0 %992, %v90
      %v994 = vpop.permute.xlu0 %993
      %996 = vset.pattern.permute.xlu0 4
      %997 = vperm.xlu0 %996, %v91
      %v998 = vpop.permute.xlu0 %997
      %1000 = vset.pattern.permute.xlu0 4
      %1001 = vperm.xlu0 %1000, %v92
      %v1002 = vpop.permute.xlu0 %1001
      %1004 = vset.pattern.permute.xlu0 4
      %1005 = vperm.xlu0 %1004, %v93
      %v1006 = vpop.permute.xlu0 %1005
      %1008 = vset.pattern.permute.xlu0 4
      %1009 = vperm.xlu0 %1008, %v94
      %v1010 = vpop.permute.xlu0 %1009
      %1012 = vset.pattern.permute.xlu0 4
      %1013 = vperm.xlu0 %1012, %v95
      %v1014 = vpop.permute.xlu0 %1013
      %1016 = vset.pattern.permute.xlu0 4
      %1017 = vperm.xlu0 %1016, %v96
      %v1018 = vpop.permute.xlu0 %1017
      %1020 = vset.pattern.permute.xlu0 4
      %1021 = vperm.xlu0 %1020, %v97
      %v1022 = vpop.permute.xlu0 %1021
      %v1024 = vmul.f32 %v962, %v898
      %v1025 = vmul.f32 %v966, %v901
      %v1026 = vmul.f32 %v970, %v906
      %v1027 = vmul.f32 %v974, %v909
      %v1028 = vmul.f32 %v978, %v914
      %v1029 = vmul.f32 %v982, %v917
      %v1030 = vmul.f32 %v986, %v922
      %v1031 = vmul.f32 %v990, %v925
      %v1032 = vmul.f32 %v994, %v930
      %v1033 = vmul.f32 %v998, %v933
      %v1034 = vmul.f32 %v1002, %v938
      %v1035 = vmul.f32 %v1006, %v941
      %v1036 = vmul.f32 %v1010, %v946
      %v1037 = vmul.f32 %v1014, %v949
      %v1038 = vmul.f32 %v1018, %v954
      %v1039 = vmul.f32 %v1022, %v957
      %v1040 = vadd.f32 %v824, %v1024
      %v1041 = vadd.f32 %v825, %v1025
      %v1042 = vadd.f32 %v826, %v1026
      %v1043 = vadd.f32 %v827, %v1027
      %v1044 = vadd.f32 %v828, %v1028
      %v1045 = vadd.f32 %v829, %v1029
      %v1046 = vadd.f32 %v830, %v1030
      %v1047 = vadd.f32 %v831, %v1031
      %v1048 = vadd.f32 %v832, %v1032
      %v1049 = vadd.f32 %v833, %v1033
      %v1050 = vadd.f32 %v834, %v1034
      %v1051 = vadd.f32 %v835, %v1035
      %v1052 = vadd.f32 %v836, %v1036
      %v1053 = vadd.f32 %v837, %v1037
      %v1054 = vadd.f32 %v838, %v1038
      %v1055 = vadd.f32 %v839, %v1039
      %v1056 = vld [vmem:[%s10 + $0x8] sm:$0xf]
      %v1057 = vld [vmem:[%s10 + $0x14] sm:$0xf]
      %v1058 = vld [vmem:[%s10 + $0x20] sm:$0xf]
      %v1059 = vld [vmem:[%s10 + $0x2c] sm:$0xf]
      %v1060 = vld [vmem:[%s11 + $0x2] sm:$0x1]
      %v1062 = vlaneseq
      %v1063 = vshrl.u32 %v1062, 7
      %v1064 = vsub.s32 0, %v1063
      %v1065 = vrot.slane %v1060, %v1064
      %v1071 = vunpack.c.l.b16 %v1056
      %v1072 = vunpack.c.l.b16 %v1057
      %v1073 = vunpack.c.l.b16 %v1058
      %v1074 = vunpack.c.l.b16 %v1059
      %v1075 = vpack.c.b16 %v1072, %v1071
      %v1076 = vpack.c.b16 %v1074, %v1073
      %1079 = vmatprep.subr.bf16.mxu0 0
      %1080 = vmatpush1.bf16.msra.mxu0 %v1075
      %1081 = vmatprep.subr.bf16.mxu0 0
      %1082 = vmatpush1.bf16.msra.mxu0 %v1076
      %1083 = vmatprep.subr.bf16.mxu0 0
      %1084 = vmatpush1.bf16.msra.mxu0 0
      %1085 = vmatprep.subr.bf16.mxu0 0
      %1086 = vmatpush1.bf16.msra.mxu0 0
      %1087 = vmatprep.subr.bf16.mxu0 0
      %1088 = vmatpush1.bf16.msra.mxu0 0
      %1089 = vmatprep.subr.bf16.mxu0 0
      %1090 = vmatpush1.bf16.msra.mxu0 0
      %1091 = vmatprep.subr.bf16.mxu0 0
      %1092 = vmatpush1.bf16.msra.mxu0 0
      %1093 = vmatprep.subr.bf16.mxu0 0
      %1094 = vmatpush1.bf16.msra.mxu0 0
      %1095 = vmatprep.subr.bf16.mxu0 0
      %1096 = vmatpush1.bf16.msra.mxu0 0
      %1097 = vmatprep.subr.bf16.mxu0 0
      %1098 = vmatpush1.bf16.msra.mxu0 0
      %1099 = vmatprep.subr.bf16.mxu0 0
      %1100 = vmatpush1.bf16.msra.mxu0 0
      %1101 = vmatprep.subr.bf16.mxu0 0
      %1102 = vmatpush1.bf16.msra.mxu0 0
      %1103 = vmatprep.subr.bf16.mxu0 0
      %1104 = vmatpush1.bf16.msra.mxu0 0
      %1105 = vmatprep.subr.bf16.mxu0 0
      %1106 = vmatpush1.bf16.msra.mxu0 0
      %1107 = vmatprep.subr.bf16.mxu0 0
      %1108 = vmatpush1.bf16.msra.mxu0 0
      %1109 = vmatprep.subr.bf16.mxu0 0
      %1110 = vmatpush1.bf16.msra.mxu0 0
      %1111 = vmatprep.mubr.bf16.mxu0 0
      %1112 = vmatmul.mubr.bf16.gmra.mrb[0].mxu0 %v640
      %v1113 = vpop.f32.mrb[0].mxu0
      %v1114 = vadd.f32 %v1065, %v1113
      %v1115 = vpop.f32.mrb[0].mxu0
      %v1116 = vpop.f32.mrb[0].mxu0
      %v1117 = vadd.f32 %v1065, %v1116
      %v1118 = vpop.f32.mrb[0].mxu0
      %1119 = vmatprep.mubr.bf16.mxu0 0
      %1120 = vmatmul.mubr.bf16.gmra.mrb[0].mxu0 %v643
      %v1121 = vpop.f32.mrb[0].mxu0
      %v1122 = vadd.f32 %v1065, %v1121
      %v1123 = vpop.f32.mrb[0].mxu0
      %v1124 = vpop.f32.mrb[0].mxu0
      %v1125 = vadd.f32 %v1065, %v1124
      %v1126 = vpop.f32.mrb[0].mxu0
      %1127 = vmatprep.mubr.bf16.mxu0 0
      %1128 = vmatmul.mubr.bf16.gmra.mrb[0].mxu0 %v646
      %v1129 = vpop.f32.mrb[0].mxu0
      %v1130 = vadd.f32 %v1065, %v1129
      %v1131 = vpop.f32.mrb[0].mxu0
      %v1132 = vpop.f32.mrb[0].mxu0
      %v1133 = vadd.f32 %v1065, %v1132
      %v1134 = vpop.f32.mrb[0].mxu0
      %1135 = vmatprep.mubr.bf16.mxu0 0
      %1136 = vmatmul.mubr.bf16.gmra.mrb[0].mxu0 %v649
      %v1137 = vpop.f32.mrb[0].mxu0
      %v1138 = vadd.f32 %v1065, %v1137
      %v1139 = vpop.f32.mrb[0].mxu0
      %v1140 = vpop.f32.mrb[0].mxu0
      %v1141 = vadd.f32 %v1065, %v1140
      %v1142 = vpop.f32.mrb[0].mxu0
      %1143 = vmatprep.mubr.bf16.mxu0 0
      %1144 = vmatmul.mubr.bf16.gmra.mrb[0].mxu0 %v652
      %v1145 = vpop.f32.mrb[0].mxu0
      %v1146 = vadd.f32 %v1065, %v1145
      %v1147 = vpop.f32.mrb[0].mxu0
      %v1148 = vpop.f32.mrb[0].mxu0
      %v1149 = vadd.f32 %v1065, %v1148
      %v1150 = vpop.f32.mrb[0].mxu0
      %1151 = vmatprep.mubr.bf16.mxu0 0
      %1152 = vmatmul.mubr.bf16.gmra.mrb[0].mxu0 %v655
      %v1153 = vpop.f32.mrb[0].mxu0
      %v1154 = vadd.f32 %v1065, %v1153
      %v1155 = vpop.f32.mrb[0].mxu0
      %v1156 = vpop.f32.mrb[0].mxu0
      %v1157 = vadd.f32 %v1065, %v1156
      %v1158 = vpop.f32.mrb[0].mxu0
      %1159 = vmatprep.mubr.bf16.mxu0 0
      %1160 = vmatmul.mubr.bf16.gmra.mrb[0].mxu0 %v658
      %v1161 = vpop.f32.mrb[0].mxu0
      %v1162 = vadd.f32 %v1065, %v1161
      %v1163 = vpop.f32.mrb[0].mxu0
      %v1164 = vpop.f32.mrb[0].mxu0
      %v1165 = vadd.f32 %v1065, %v1164
      %v1166 = vpop.f32.mrb[0].mxu0
      %1167 = vmatprep.mubr.bf16.mxu0 0
      %1168 = vmatmul.mubr.bf16.gmra.mrb[0].mxu0 %v661
      %v1169 = vpop.f32.mrb[0].mxu0
      %v1170 = vadd.f32 %v1065, %v1169
      %v1171 = vpop.f32.mrb[0].mxu0
      %v1172 = vpop.f32.mrb[0].mxu0
      %v1173 = vadd.f32 %v1065, %v1172
      %v1174 = vpop.f32.mrb[0].mxu0
      %1175 = vdwg.mxu0
      %1176 = vset.pattern.permute.xlu0 5
      %1177 = vperm.xlu0 %1176, %v82
      %v1178 = vpop.permute.xlu0 %1177
      %1180 = vset.pattern.permute.xlu0 5
      %1181 = vperm.xlu0 %1180, %v83
      %v1182 = vpop.permute.xlu0 %1181
      %1184 = vset.pattern.permute.xlu0 5
      %1185 = vperm.xlu0 %1184, %v84
      %v1186 = vpop.permute.xlu0 %1185
      %1188 = vset.pattern.permute.xlu0 5
      %1189 = vperm.xlu0 %1188, %v85
      %v1190 = vpop.permute.xlu0 %1189
      %1192 = vset.pattern.permute.xlu0 5
      %1193 = vperm.xlu0 %1192, %v86
      %v1194 = vpop.permute.xlu0 %1193
      %1196 = vset.pattern.permute.xlu0 5
      %1197 = vperm.xlu0 %1196, %v87
      %v1198 = vpop.permute.xlu0 %1197
      %1200 = vset.pattern.permute.xlu0 5
      %1201 = vperm.xlu0 %1200, %v88
      %v1202 = vpop.permute.xlu0 %1201
      %1204 = vset.pattern.permute.xlu0 5
      %1205 = vperm.xlu0 %1204, %v89
      %v1206 = vpop.permute.xlu0 %1205
      %1208 = vset.pattern.permute.xlu0 5
      %1209 = vperm.xlu0 %1208, %v90
      %v1210 = vpop.permute.xlu0 %1209
      %1212 = vset.pattern.permute.xlu0 5
      %1213 = vperm.xlu0 %1212, %v91
      %v1214 = vpop.permute.xlu0 %1213
      %1216 = vset.pattern.permute.xlu0 5
      %1217 = vperm.xlu0 %1216, %v92
      %v1218 = vpop.permute.xlu0 %1217
      %1220 = vset.pattern.permute.xlu0 5
      %1221 = vperm.xlu0 %1220, %v93
      %v1222 = vpop.permute.xlu0 %1221
      %1224 = vset.pattern.permute.xlu0 5
      %1225 = vperm.xlu0 %1224, %v94
      %v1226 = vpop.permute.xlu0 %1225
      %1228 = vset.pattern.permute.xlu0 5
      %1229 = vperm.xlu0 %1228, %v95
      %v1230 = vpop.permute.xlu0 %1229
      %1232 = vset.pattern.permute.xlu0 5
      %1233 = vperm.xlu0 %1232, %v96
      %v1234 = vpop.permute.xlu0 %1233
      %1236 = vset.pattern.permute.xlu0 5
      %1237 = vperm.xlu0 %1236, %v97
      %v1238 = vpop.permute.xlu0 %1237
      %v1240 = vmul.f32 %v1178, %v1114
      %v1241 = vmul.f32 %v1182, %v1117
      %v1242 = vmul.f32 %v1186, %v1122
      %v1243 = vmul.f32 %v1190, %v1125
      %v1244 = vmul.f32 %v1194, %v1130
      %v1245 = vmul.f32 %v1198, %v1133
      %v1246 = vmul.f32 %v1202, %v1138
      %v1247 = vmul.f32 %v1206, %v1141
      %v1248 = vmul.f32 %v1210, %v1146
      %v1249 = vmul.f32 %v1214, %v1149
      %v1250 = vmul.f32 %v1218, %v1154
      %v1251 = vmul.f32 %v1222, %v1157
      %v1252 = vmul.f32 %v1226, %v1162
      %v1253 = vmul.f32 %v1230, %v1165
      %v1254 = vmul.f32 %v1234, %v1170
      %v1255 = vmul.f32 %v1238, %v1173
      %v1256 = vadd.f32 %v1040, %v1240
      %v1257 = vadd.f32 %v1041, %v1241
      %v1258 = vadd.f32 %v1042, %v1242
      %v1259 = vadd.f32 %v1043, %v1243
      %v1260 = vadd.f32 %v1044, %v1244
      %v1261 = vadd.f32 %v1045, %v1245
      %v1262 = vadd.f32 %v1046, %v1246
      %v1263 = vadd.f32 %v1047, %v1247
      %v1264 = vadd.f32 %v1048, %v1248
      %v1265 = vadd.f32 %v1049, %v1249
      %v1266 = vadd.f32 %v1050, %v1250
      %v1267 = vadd.f32 %v1051, %v1251
      %v1268 = vadd.f32 %v1052, %v1252
      %v1269 = vadd.f32 %v1053, %v1253
      %v1270 = vadd.f32 %v1054, %v1254
      %v1271 = vadd.f32 %v1055, %v1255
      %v1272 = vld [vmem:[%s3 + $0x1] sm:$0x1]
      %v1273 = vlaneseq
      %v1274 = vshrl.u32 %v1273, 7
      %v1275 = vsub.s32 0, %v1274
      %v1276 = vrot.slane %v1272, %v1275
      %vm1277 = vcmp.eq.s32.totalorder %v1276, %v81
      %v1278 = vsel %vm1277, 1, 0
      %v1279 = vcvt.s32.f32 %v1278
      %v1280 = vpack.c.bf16 %v1279, %v1279
      %v1281 = vld [vmem:[#allocation3] sm:$0xff]
      %v1282 = vpack.c.bf16 %v1257, %v1256
      %v1283 = vpack.c.bf16 %v1259, %v1258
      %v1284 = vpack.c.bf16 %v1261, %v1260
      %v1285 = vpack.c.bf16 %v1263, %v1262
      %v1286 = vpack.c.bf16 %v1265, %v1264
      %v1287 = vpack.c.bf16 %v1267, %v1266
      %v1288 = vpack.c.bf16 %v1269, %v1268
      %v1289 = vpack.c.bf16 %v1271, %v1270
      %1290 = vmatprep.subr.bf16.mxu0 0
      %1291 = vmatpush1.bf16.msra.mxu0 %v1282
      %1292 = vmatprep.subr.bf16.mxu0 0
      %1293 = vmatpush1.bf16.msra.mxu0 %v1283
      %1294 = vmatprep.subr.bf16.mxu0 0
      %1295 = vmatpush1.bf16.msra.mxu0 %v1284
      %1296 = vmatprep.subr.bf16.mxu0 0
      %1297 = vmatpush1.bf16.msra.mxu0 %v1285
      %1298 = vmatprep.subr.bf16.mxu0 0
      %1299 = vmatpush1.bf16.msra.mxu0 %v1286
      %1300 = vmatprep.subr.bf16.mxu0 0
      %1301 = vmatpush1.bf16.msra.mxu0 %v1287
      %1302 = vmatprep.subr.bf16.mxu0 0
      %1303 = vmatpush1.bf16.msra.mxu0 %v1288
      %1304 = vmatprep.subr.bf16.mxu0 0
      %1305 = vmatpush1.bf16.msra.mxu0 %v1289
      %1306 = vmatprep.subr.bf16.mxu0 0
      %1307 = vmatpush1.bf16.msra.mxu0 0
      %1308 = vmatprep.subr.bf16.mxu0 0
      %1309 = vmatpush1.bf16.msra.mxu0 0
      %1310 = vmatprep.subr.bf16.mxu0 0
      %1311 = vmatpush1.bf16.msra.mxu0 0
      %1312 = vmatprep.subr.bf16.mxu0 0
      %1313 = vmatpush1.bf16.msra.mxu0 0
      %1314 = vmatprep.subr.bf16.mxu0 0
      %1315 = vmatpush1.bf16.msra.mxu0 0
      %1316 = vmatprep.subr.bf16.mxu0 0
      %1317 = vmatpush1.bf16.msra.mxu0 0
      %1318 = vmatprep.subr.bf16.mxu0 0
      %1319 = vmatpush1.bf16.msra.mxu0 0
      %1320 = vmatprep.subr.bf16.mxu0 0
      %1321 = vmatpush1.bf16.msra.mxu0 0
      %1322 = vmatprep.mubr.bf16.mxu0 0
      %1323 = vmatmul.mubr.bf16.gmra.mrb[0].mxu0 %v1280
      %v1324 = vpop.f32.mrb[0].mxu0
      %v1325 = vadd.f32 0.0, %v1324
      %v1326 = vpop.f32.mrb[0].mxu0
      %v1327 = vpop.f32.mrb[0].mxu0
      %v1328 = vpop.f32.mrb[0].mxu0
      %1329 = vdwg.mxu0
      %v1330 = vadd.f32 %v1281, %v1325
      %1331 = vst [vmem:[#allocation3] sm:$0xff] %v1330
    $region61: #{tpu_custom_call.1} parent=1 // pred_fallthru
      _
    // Predicated region
    $region62: #{tpu_custom_call.1} parent=1 // pred_check
      %p1332 = pneg %p57
    $region63: #{tpu_custom_call.1} parent=1 // pred_check_branch
      %1334 = sbr.rel (%p1332) target = $region65
    $region64: #{tpu_custom_call.1} parent=1 // pred_region
      %v1335 = vld [vmem:[%s4] sm:$0xff]
      %v1336 = vld [vmem:[%s7] sm:$0x1]
      %1338 = vset.pattern.permute.xlu0 0
      %1339 = vperm.xlu0 %1338, %v1335
      %v1340 = vpop.permute.xlu0 %1339
      %v1342 = vlaneseq
      %v1343 = vshrl.u32 %v1342, 7
      %v1344 = vsub.s32 0, %v1343
      %v1345 = vrot.slane %v1336, %v1344
      %v1346 = vmul.f32 %v1340, %v1345
      %v1347 = vld [vmem:[%s12] sm:$0x1]
      %v1348 = vlaneseq
      %v1349 = vshrl.u32 %v1348, 7
      %v1350 = vsub.s32 0, %v1349
      %v1351 = vrot.slane %v1347, %v1350
      %v1352 = vmul.f32 %v1340, %v1351
      %v1353 = vld [vmem:[%s7 + $0x1] sm:$0x1]
      %1354 = vset.pattern.permute.xlu0 1
      %1355 = vperm.xlu0 %1354, %v1335
      %v1356 = vpop.permute.xlu0 %1355
      %v1358 = vlaneseq
      %v1359 = vshrl.u32 %v1358, 7
      %v1360 = vsub.s32 0, %v1359
      %v1361 = vrot.slane %v1353, %v1360
      %v1362 = vmul.f32 %v1356, %v1361
      %v1363 = vadd.f32 %v1346, %v1362
      %v1364 = vld [vmem:[%s12 + $0x1] sm:$0x1]
      %v1365 = vlaneseq
      %v1366 = vshrl.u32 %v1365, 7
      %v1367 = vsub.s32 0, %v1366
      %v1368 = vrot.slane %v1364, %v1367
      %v1369 = vmul.f32 %v1356, %v1368
      %v1370 = vadd.f32 %v1352, %v1369
      %v1371 = vld [vmem:[%s7 + $0x2] sm:$0x1]
      %1372 = vset.pattern.permute.xlu0 2
      %1373 = vperm.xlu0 %1372, %v1335
      %v1374 = vpop.permute.xlu0 %1373
      %v1376 = vlaneseq
      %v1377 = vshrl.u32 %v1376, 7
      %v1378 = vsub.s32 0, %v1377
      %v1379 = vrot.slane %v1371, %v1378
      %v1380 = vmul.f32 %v1374, %v1379
      %v1381 = vadd.f32 %v1363, %v1380
      %v1382 = vld [vmem:[%s12 + $0x2] sm:$0x1]
      %v1383 = vlaneseq
      %v1384 = vshrl.u32 %v1383, 7
      %v1385 = vsub.s32 0, %v1384
      %v1386 = vrot.slane %v1382, %v1385
      %v1387 = vmul.f32 %v1374, %v1386
      %v1388 = vadd.f32 %v1370, %v1387
      %v1389 = vld [vmem:[#allocation2] sm:$0xff]
      %1390 = vset.pattern.permute.xlu0 3
      %1391 = vperm.xlu0 %1390, %v1335
      %v1392 = vpop.permute.xlu0 %1391
      %v1394 = vmul.f32 %v1389, %v1392
      %v1395 = vld [vmem:[%s6] sm:$0x1]
      %v1397 = vlaneseq
      %v1398 = vshrl.u32 %v1397, 7
      %v1399 = vsub.s32 0, %v1398
      %v1400 = vrot.slane %v1395, %v1399
      %v1402 = vadd.f32 %v1394, %v1400
      %v1403 = vadd.f32 %v1402, %v1381
      %v1404 = vld [vmem:[#allocation3] sm:$0xff]
      %1405 = vset.pattern.permute.xlu0 4
      %1406 = vperm.xlu0 %1405, %v1335
      %v1407 = vpop.permute.xlu0 %1406
      %v1409 = vmul.f32 %v1404, %v1407
      %v1410 = vld [vmem:[%s13] sm:$0x1]
      %v1412 = vlaneseq
      %v1413 = vshrl.u32 %v1412, 7
      %v1414 = vsub.s32 0, %v1413
      %v1415 = vrot.slane %v1410, %v1414
      %v1417 = vadd.f32 %v1409, %v1415
      %v1418 = vadd.f32 %v1417, %v1388
      %v1419 = vadd.f32 %v1403, %v1418
      %v1420 = vmul.f32 %v1419, 0.5
      %1421 = vst [vmem:[#allocation7] sm:$0xff] %v1420
    $region65: #{tpu_custom_call.1} parent=1 // pred_fallthru
      _
    // Predicated region
    $region66: #{tpu_custom_call.1} parent=1 // pred_check
      _
    $region67: #{tpu_custom_call.1} parent=1 // pred_check_branch
      %1423 = sbr.rel (0) target = $region69
    $region68: #{tpu_custom_call.1} parent=1 // pred_region
      %s1425 = ssub.s32 128, 128
      %1426 = vsyncadd [#allocation8], %s1425
      %s1428 = sshll.u32 [#allocation7], 4
      %s1429 = int_to_ptr.vmem [resolvable:$true] %s1428
      %1431 = dma.vmem_to_hbm [thread:$0]  %s1429, 128, %s14, [#allocation8]
    $region69: #{tpu_custom_call.1} parent=1 // pred_fallthru
      _
    // Predicated region
    $region70: #{tpu_custom_call.1} parent=1 // pred_check
      _
    $region71: #{tpu_custom_call.1} parent=1 // pred_check_branch
      %1433 = sbr.rel (0) target = $region73
    $region72: #{tpu_custom_call.1} parent=1 // pred_region
      %1434 = dma.done [#allocation8], 128
    $region73: #{tpu_custom_call.1} parent=1 // pred_fallthru
      _
    %1435 = vsyncpa [#allocation8], 1

</llo_original>
